<compile_context>
chip_gen: v6e
topology: v6e:2x2x1
jax: 0.10.0
libtpu: 0.0.40
codegen_flags: <defaults>
</compile_context>

<pallas_src>
import math

import jax
import jax.numpy as jnp
from jax import lax
from jax.experimental import pallas as pl
from jax.experimental.pallas import tpu as pltpu


def _round_up(x, m):
    return (x + m - 1) // m * m


def _gelu_exact(x):
    # PyTorch nn.GELU() default: exact (erf-based) GELU.
    return 0.5 * x * (1.0 + lax.erf(x * (1.0 / math.sqrt(2.0))))


def gnn_head_kernel(batch_ref, hnode_ref, fp_ref,
                    w1n_ref, w1f_ref, b1_ref, w2_ref, b2_ref,
                    out_ref, hg_acc):
    n = pl.program_id(0)
    G = hg_acc.shape[0]
    TN = hnode_ref.shape[0]

    @pl.when(n == 0)
    def _init():
        hg_acc[...] = jnp.zeros_like(hg_acc)

    # ---- global_add_pool for this node tile: one-hot matmul on the MXU ----
    # Padded nodes carry batch_id = -1 and match no graph row.
    batch = batch_ref[...]                                       # [1, TN] int32
    graph_ids = lax.broadcasted_iota(jnp.int32, (G, TN), 0)      # [G, TN]
    onehot = (graph_ids == batch).astype(jnp.bfloat16)           # [G, TN] bf16
    hg_acc[...] += jnp.dot(onehot, hnode_ref[...],
                           preferred_element_type=jnp.float32)   # [G, D] f32

    # ---- predictor MLP on the last grid step (split-weight concat form) ----
    @pl.when(n == pl.num_programs(0) - 1)
    def _finalize():
        h_graph = hg_acc[...]                                    # [G, D] f32
        z = (jnp.dot(h_graph, w1n_ref[...],
                     preferred_element_type=jnp.float32)
             + jnp.dot(fp_ref[...], w1f_ref[...],
                       preferred_element_type=jnp.float32)
             + b1_ref[...])                                      # [G, H]
        a = _gelu_exact(z)
        # drop1 has p = 0.0 in this module -> identity.
        out_ref[...] = (jnp.dot(a, w2_ref[...],
                                preferred_element_type=jnp.float32)
                        + b2_ref[...])                           # [G, T]


def gnn_head(batch_ids, h_node, fp, params, *, tile_n=512):
    """batch_ids: [N] int32 (sorted per graph), h_node: [N, D], fp: [G, 2048]."""
    N, D = h_node.shape
    G, F = fp.shape
    H = params["w1_node"].shape[1]
    T = params["w2"].shape[1]

    d_pad = _round_up(D, 128)
    h_pad = _round_up(H, 128)
    t_pad = _round_up(T, 128)
    g_pad = _round_up(G, 8)
    tn = min(tile_n, _round_up(N, 128))
    n_pad = _round_up(N, tn)

    # ---- pad + cast outside the kernel (layout plumbing, not compute) ----
    batch_p = jnp.full((1, n_pad), -1, jnp.int32).at[0, :N].set(
        batch_ids.astype(jnp.int32))
    hnode_p = jnp.zeros((n_pad, d_pad), jnp.bfloat16).at[:N, :D].set(
        h_node.astype(jnp.bfloat16))
    fp_p = jnp.zeros((g_pad, F), jnp.bfloat16).at[:G, :].set(
        fp.astype(jnp.bfloat16))
    w1n_p = jnp.zeros((d_pad, h_pad), jnp.float32).at[:D, :H].set(
        params["w1_node"].astype(jnp.float32))
    w1f_p = jnp.zeros((F, h_pad), jnp.bfloat16).at[:, :H].set(
        params["w1_fp"].astype(jnp.bfloat16))
    b1_p = jnp.zeros((1, h_pad), jnp.float32).at[:, :H].set(
        params["b1"].astype(jnp.float32))
    w2_p = jnp.zeros((h_pad, t_pad), jnp.float32).at[:H, :T].set(
        params["w2"].astype(jnp.float32))
    b2_p = jnp.zeros((1, t_pad), jnp.float32).at[:, :T].set(
        params["b2"].astype(jnp.float32))

    grid = (n_pad // tn,)

    # Resident-VMEM estimate with headroom (covers v5e's 16 MiB scoped default,
    # stays well under v7x's 64 MiB physical).
    vmem_bytes = (2 * (tn * d_pad * 2 + tn * 4)        # double-buffered node stream
                  + g_pad * F * 2                       # fp (bf16)
                  + d_pad * h_pad * 4                   # w1_node
                  + F * h_pad * 2                       # w1_fp (bf16)
                  + h_pad * 4 + h_pad * t_pad * 4 + t_pad * 4
                  + g_pad * t_pad * 4                   # out
                  + g_pad * d_pad * 4)                  # accumulator scratch
    vmem_limit = int(min(max(2 * vmem_bytes, 8 << 20), 56 << 20))

    const = lambda n: (0, 0)
    out = pl.pallas_call(
        gnn_head_kernel,
        out_shape=jax.ShapeDtypeStruct((g_pad, t_pad), jnp.float32),
        grid_spec=pltpu.PrefetchScalarGridSpec(
            num_scalar_prefetch=0,
            grid=grid,
            in_specs=[
                pl.BlockSpec((1, tn), lambda n: (0, n)),       # batch ids
                pl.BlockSpec((tn, d_pad), lambda n: (n, 0)),   # h_node tile
                pl.BlockSpec((g_pad, F), const),               # fp (resident)
                pl.BlockSpec((d_pad, h_pad), const),           # w1_node
                pl.BlockSpec((F, h_pad), const),               # w1_fp
                pl.BlockSpec((1, h_pad), const),               # b1
                pl.BlockSpec((h_pad, t_pad), const),           # w2
                pl.BlockSpec((1, t_pad), const),               # b2
            ],
            out_specs=pl.BlockSpec((g_pad, t_pad), const),
            scratch_shapes=[pltpu.VMEM((g_pad, d_pad), jnp.float32)],
        ),
        compiler_params=pltpu.CompilerParams(
            dimension_semantics=("arbitrary",),
            vmem_limit_bytes=vmem_limit),
    )(batch_p, hnode_p, fp_p, w1n_p, w1f_p, b1_p, w2_p, b2_p)
    return out[:G, :T]


def reference(batch_ids, h_node, fp, params, num_graphs):
    """Plain-JAX f32 reference mirroring the PyTorch forward."""
    onehot = (jnp.arange(num_graphs)[:, None] == batch_ids[None, :]).astype(jnp.float32)
    h_graph = onehot @ h_node                                   # global_add_pool
    h_cat = jnp.concatenate([h_graph, fp], axis=1)
    w1 = jnp.concatenate([params["w1_node"], params["w1_fp"]], axis=0)
    z = h_cat @ w1 + params["b1"]
    a = 0.5 * z * (1.0 + lax.erf(z / math.sqrt(2.0)))
    return a @ params["w2"] + params["b2"]


if __name__ == "__main__":
    # Small shapes consistent with the module structure.
    emb_dim = 32          # module default is 300; kept small
    num_task = 8
    fp_dim = 2048         # hard-coded in the module (emb_dim + 2048)
    hidden = 4 * emb_dim  # MLP hidden_features = 4 * emb_dim
    num_graphs = 2
    num_nodes = 16

    key = jax.random.PRNGKey(0)
    k = jax.random.split(key, 8)

    # Deterministic synthetic parameters ([in_features, out_features] layout,
    # i.e. transpose of PyTorch nn.Linear weight; fc1 weight split in two).
    params = {
        "w1_node": jax.random.normal(k[0], (emb_dim, hidden), jnp.float32) * 0.02,
        "w1_fp":   jax.random.normal(k[1], (fp_dim,  hidden), jnp.float32) * 0.02,
        "b1":      jax.random.normal(k[2], (1, hidden), jnp.float32) * 0.02,
        "w2":      jax.random.normal(k[3], (hidden, num_task), jnp.float32) * 0.02,
        "b2":      jax.random.normal(k[4], (1, num_task), jnp.float32) * 0.02,
    }

    # Synthetic inputs: node embeddings (stand-in for gnn_node output),
    # per-node graph assignment (sorted, as in PyG batching), per-graph fp.
    h_node = jax.random.normal(k[5], (num_nodes, emb_dim), jnp.float32)
    fp = (jax.random.uniform(k[6], (num_graphs, fp_dim)) > 0.5).astype(jnp.float32)
    batch_ids = jnp.sort(
        jax.random.randint(k[7], (num_nodes,), 0, num_graphs, dtype=jnp.int32))

    out = gnn_head(batch_ids, h_node, fp, params)
    out = jax.block_until_ready(out)

    ref = reference(batch_ids, h_node, fp, params, num_graphs)
    assert out.shape == (num_graphs, num_task)
    # bf16 cast of h_node / fp / w1_fp (f32 accumulation) -> slightly looser tol.
    assert jnp.allclose(out, ref, atol=1e-2, rtol=1e-2), (out, ref)

    print("KERNEL_OK")
</pallas_src>

<mosaic_0001>
module attributes {stable_mosaic.version = 11 : i64} {
  func.func @gnn_head_kernel(%arg0: i32, %arg1: memref<1x128xi32, #tpu.memory_space<vmem>>, %arg2: memref<128x128xbf16, #tpu.memory_space<vmem>>, %arg3: memref<8x2048xbf16, #tpu.memory_space<vmem>>, %arg4: memref<128x128xf32, #tpu.memory_space<vmem>>, %arg5: memref<2048x128xbf16, #tpu.memory_space<vmem>>, %arg6: memref<1x128xf32, #tpu.memory_space<vmem>>, %arg7: memref<128x128xf32, #tpu.memory_space<vmem>>, %arg8: memref<1x128xf32, #tpu.memory_space<vmem>>, %arg9: memref<8x128xf32, #tpu.memory_space<vmem>>, %arg10: memref<8x128xf32, #tpu.memory_space<vmem>>) attributes {dimension_semantics = [#tpu.dimension_semantics<arbitrary>], iteration_bounds = array<i64: 1>, scalar_prefetch = 0 : i64, scratch_operands = 1 : i64, tpu.core_type = #tpu.core_type<tc>, window_params = [{transform_indices = @transform_0, window_bounds = array<i64: 1, 128>}, {transform_indices = @transform_1, window_bounds = array<i64: 128, 128>}, {pipeline_mode = #tpu.pipeline_mode<synchronous>, transform_indices = @transform_2, window_bounds = array<i64: 8, 2048>}, {pipeline_mode = #tpu.pipeline_mode<synchronous>, transform_indices = @transform_3, window_bounds = array<i64: 128, 128>}, {pipeline_mode = #tpu.pipeline_mode<synchronous>, transform_indices = @transform_4, window_bounds = array<i64: 2048, 128>}, {pipeline_mode = #tpu.pipeline_mode<synchronous>, transform_indices = @transform_5, window_bounds = array<i64: 1, 128>}, {pipeline_mode = #tpu.pipeline_mode<synchronous>, transform_indices = @transform_6, window_bounds = array<i64: 128, 128>}, {pipeline_mode = #tpu.pipeline_mode<synchronous>, transform_indices = @transform_7, window_bounds = array<i64: 1, 128>}, {pipeline_mode = #tpu.pipeline_mode<synchronous>, transform_indices = @transform_8, window_bounds = array<i64: 8, 128>}]} {
    %c0_i32 = arith.constant 0 : i32
    %0 = arith.cmpi eq, %arg0, %c0_i32 : i32
    %1 = arith.extui %0 : i1 to i32
    %c0_i32_0 = arith.constant 0 : i32
    %2 = arith.cmpi ne, %1, %c0_i32_0 : i32
    scf.if %2 {
      %cst_10 = arith.constant 0.000000e+00 : f32
      %18 = vector.broadcast %cst_10 : f32 to vector<8x128xf32>
      %c0_11 = arith.constant 0 : index
      %c0_12 = arith.constant 0 : index
      %19 = vector.load %arg10[%c0_11, %c0_12] : memref<8x128xf32, #tpu.memory_space<vmem>>, vector<8x128xf32>
      tpu.vector_store %arg10[%c0_11, %c0_12], %18 {strides = array<i32>} : memref<8x128xf32, #tpu.memory_space<vmem>>, vector<8x128xf32>,
    } else {
    }
    %c0 = arith.constant 0 : index
    %c0_1 = arith.constant 0 : index
    %3 = vector.load %arg1[%c0, %c0_1] : memref<1x128xi32, #tpu.memory_space<vmem>>, vector<1x128xi32>
    %4 = tpu.iota {dimensions = array<i32: 0>} : vector<8x128xi32>
    %5 = vector.broadcast %3 : vector<1x128xi32> to vector<8x128xi32>
    %6 = arith.cmpi eq, %4, %5 : vector<8x128xi32>
    %7 = arith.extui %6 : vector<8x128xi1> to vector<8x128xi32>
    %8 = arith.sitofp %7 : vector<8x128xi32> to vector<8x128xf32>
    %9 = arith.truncf %8 : vector<8x128xf32> to vector<8x128xbf16>
    %c0_2 = arith.constant 0 : index
    %c0_3 = arith.constant 0 : index
    %10 = vector.load %arg10[%c0_2, %c0_3] : memref<8x128xf32, #tpu.memory_space<vmem>>, vector<8x128xf32>
    %c0_4 = arith.constant 0 : index
    %c0_5 = arith.constant 0 : index
    %11 = vector.load %arg2[%c0_4, %c0_5] : memref<128x128xbf16, #tpu.memory_space<vmem>>, vector<128x128xbf16>
    %cst = arith.constant dense<0.000000e+00> : vector<8x128xf32>
    %12 = tpu.matmul %9, %11, %cst {dimension_numbers = #tpu.dot_dimension_numbers<[1], [0], [0], [1], [0, 0, 1, 1], [], []>} : vector<8x128xbf16>, vector<128x128xbf16>, vector<8x128xf32> -> vector<8x128xf32>
    %13 = arith.addf %10, %12 : vector<8x128xf32>
    %c0_6 = arith.constant 0 : index
    %c0_7 = arith.constant 0 : index
    %14 = vector.load %arg10[%c0_6, %c0_7] : memref<8x128xf32, #tpu.memory_space<vmem>>, vector<8x128xf32>
    tpu.vector_store %arg10[%c0_6, %c0_7], %13 {strides = array<i32>} : memref<8x128xf32, #tpu.memory_space<vmem>>, vector<8x128xf32>,
    %c0_i32_8 = arith.constant 0 : i32
    %15 = arith.cmpi eq, %arg0, %c0_i32_8 : i32
    %16 = arith.extui %15 : i1 to i32
    %c0_i32_9 = arith.constant 0 : i32
    %17 = arith.cmpi ne, %16, %c0_i32_9 : i32
    scf.if %17 {
      %c0_10 = arith.constant 0 : index
      %c0_11 = arith.constant 0 : index
      %18 = vector.load %arg10[%c0_10, %c0_11] : memref<8x128xf32, #tpu.memory_space<vmem>>, vector<8x128xf32>
      %c0_12 = arith.constant 0 : index
      %c0_13 = arith.constant 0 : index
      %19 = vector.load %arg4[%c0_12, %c0_13] : memref<128x128xf32, #tpu.memory_space<vmem>>, vector<128x128xf32>
      %cst_14 = arith.constant dense<0.000000e+00> : vector<8x128xf32>
      %20 = tpu.matmul %18, %19, %cst_14 {dimension_numbers = #tpu.dot_dimension_numbers<[1], [0], [0], [1], [0, 0, 1, 1], [], []>} : vector<8x128xf32>, vector<128x128xf32>, vector<8x128xf32> -> vector<8x128xf32>
      %c0_15 = arith.constant 0 : index
      %c0_16 = arith.constant 0 : index
      %21 = vector.load %arg3[%c0_15, %c0_16] : memref<8x2048xbf16, #tpu.memory_space<vmem>>, vector<8x2048xbf16>
      %c0_17 = arith.constant 0 : index
      %c0_18 = arith.constant 0 : index
      %22 = vector.load %arg5[%c0_17, %c0_18] : memref<2048x128xbf16, #tpu.memory_space<vmem>>, vector<2048x128xbf16>
      %cst_19 = arith.constant dense<0.000000e+00> : vector<8x128xf32>
      %23 = tpu.matmul %21, %22, %cst_19 {dimension_numbers = #tpu.dot_dimension_numbers<[1], [0], [0], [1], [0, 0, 1, 1], [], []>} : vector<8x2048xbf16>, vector<2048x128xbf16>, vector<8x128xf32> -> vector<8x128xf32>
      %24 = arith.addf %20, %23 : vector<8x128xf32>
      %c0_20 = arith.constant 0 : index
      %c0_21 = arith.constant 0 : index
      %25 = vector.load %arg6[%c0_20, %c0_21] : memref<1x128xf32, #tpu.memory_space<vmem>>, vector<1x128xf32>
      %26 = vector.broadcast %25 : vector<1x128xf32> to vector<8x128xf32>
      %27 = arith.addf %24, %26 : vector<8x128xf32>
      %cst_22 = arith.constant 5.000000e-01 : f32
      %28 = vector.broadcast %cst_22 : f32 to vector<8x128xf32>
      %29 = arith.mulf %28, %27 : vector<8x128xf32>
      %cst_23 = arith.constant 0.707106769 : f32
      %30 = vector.broadcast %cst_23 : f32 to vector<8x128xf32>
      %31 = arith.mulf %27, %30 : vector<8x128xf32>
      %32 = math.erf %31 : vector<8x128xf32>
      %cst_24 = arith.constant 1.000000e+00 : f32
      %33 = vector.broadcast %cst_24 : f32 to vector<8x128xf32>
      %34 = arith.addf %33, %32 : vector<8x128xf32>
      %35 = arith.mulf %29, %34 : vector<8x128xf32>
      %c0_25 = arith.constant 0 : index
      %c0_26 = arith.constant 0 : index
      %36 = vector.load %arg7[%c0_25, %c0_26] : memref<128x128xf32, #tpu.memory_space<vmem>>, vector<128x128xf32>
      %cst_27 = arith.constant dense<0.000000e+00> : vector<8x128xf32>
      %37 = tpu.matmul %35, %36, %cst_27 {dimension_numbers = #tpu.dot_dimension_numbers<[1], [0], [0], [1], [0, 0, 1, 1], [], []>} : vector<8x128xf32>, vector<128x128xf32>, vector<8x128xf32> -> vector<8x128xf32>
      %c0_28 = arith.constant 0 : index
      %c0_29 = arith.constant 0 : index
      %38 = vector.load %arg8[%c0_28, %c0_29] : memref<1x128xf32, #tpu.memory_space<vmem>>, vector<1x128xf32>
      %39 = vector.broadcast %38 : vector<1x128xf32> to vector<8x128xf32>
      %40 = arith.addf %37, %39 : vector<8x128xf32>
      %c0_30 = arith.constant 0 : index
      %c0_31 = arith.constant 0 : index
      %41 = vector.load %arg9[%c0_30, %c0_31] : memref<8x128xf32, #tpu.memory_space<vmem>>, vector<8x128xf32>
      tpu.vector_store %arg9[%c0_30, %c0_31], %40 {strides = array<i32>} : memref<8x128xf32, #tpu.memory_space<vmem>>, vector<8x128xf32>,
    } else {
    }
    return
  }
  func.func @transform_0(%arg0: i32) -> (i32, i32) {
    %c0_i32 = arith.constant 0 : i32
    %c0_i32_0 = arith.constant 0 : i32
    return %c0_i32, %arg0 : i32, i32
  }
  func.func @transform_1(%arg0: i32) -> (i32, i32) {
    %c0_i32 = arith.constant 0 : i32
    %c0_i32_0 = arith.constant 0 : i32
    return %arg0, %c0_i32 : i32, i32
  }
  func.func @transform_2(%arg0: i32) -> (i32, i32) {
    %c0_i32 = arith.constant 0 : i32
    %c0_i32_0 = arith.constant 0 : i32
    %c0_i32_1 = arith.constant 0 : i32
    return %c0_i32, %c0_i32_0 : i32, i32
  }
  func.func @transform_3(%arg0: i32) -> (i32, i32) {
    %c0_i32 = arith.constant 0 : i32
    %c0_i32_0 = arith.constant 0 : i32
    %c0_i32_1 = arith.constant 0 : i32
    return %c0_i32, %c0_i32_0 : i32, i32
  }
  func.func @transform_4(%arg0: i32) -> (i32, i32) {
    %c0_i32 = arith.constant 0 : i32
    %c0_i32_0 = arith.constant 0 : i32
    %c0_i32_1 = arith.constant 0 : i32
    return %c0_i32, %c0_i32_0 : i32, i32
  }
  func.func @transform_5(%arg0: i32) -> (i32, i32) {
    %c0_i32 = arith.constant 0 : i32
    %c0_i32_0 = arith.constant 0 : i32
    %c0_i32_1 = arith.constant 0 : i32
    return %c0_i32, %c0_i32_0 : i32, i32
  }
  func.func @transform_6(%arg0: i32) -> (i32, i32) {
    %c0_i32 = arith.constant 0 : i32
    %c0_i32_0 = arith.constant 0 : i32
    %c0_i32_1 = arith.constant 0 : i32
    return %c0_i32, %c0_i32_0 : i32, i32
  }
  func.func @transform_7(%arg0: i32) -> (i32, i32) {
    %c0_i32 = arith.constant 0 : i32
    %c0_i32_0 = arith.constant 0 : i32
    %c0_i32_1 = arith.constant 0 : i32
    return %c0_i32, %c0_i32_0 : i32, i32
  }
  func.func @transform_8(%arg0: i32) -> (i32, i32) {
    %c0_i32 = arith.constant 0 : i32
    %c0_i32_0 = arith.constant 0 : i32
    %c0_i32_1 = arith.constant 0 : i32
    return %c0_i32, %c0_i32_0 : i32, i32
  }
}

</mosaic_0001>

<llo_original>
// kernel: tpu_custom_call.1
$region0: #{tpu_custom_call.1}
  #allocation0 [shape = 'u32[]', space=smem, size = 0x4, offset = 0x4, fixed_abs, tag = 'smem constant byte address 0x4 - core index']
  #allocation1 [shape = 'u32[144,128]{1,0:T(1,128)}', space=vmem, size = 0x12000, scoped, tag = 'internal scratch']
  #allocation2 [shape = 'f32[8,128]{1,0:T(8,128)}', space=vmem, size = 0x1000, scoped, tag = 'scratch operand']
  %s0 = inlined_call_operand.hbm [shape: s32[1,128], index: 0, kind: input, shape index: {}]
  %s1 = inlined_call_operand.hbm [shape: bf16[128,128], index: 1, kind: input, shape index: {}]
  %s2 = inlined_call_operand.hbm [shape: bf16[8,2048], index: 2, kind: input, shape index: {}]
  %s3 = inlined_call_operand.hbm [shape: f32[128,128], index: 3, kind: input, shape index: {}]
  %s4 = inlined_call_operand.hbm [shape: bf16[2048,128], index: 4, kind: input, shape index: {}]
  %s5 = inlined_call_operand.vmem [shape: f32[1,128], index: 5, kind: input, shape index: {}]
  %s6 = inlined_call_operand.hbm [shape: f32[128,128], index: 6, kind: input, shape index: {}]
  %s7 = inlined_call_operand.vmem [shape: f32[1,128], index: 7, kind: input, shape index: {}]
  %s8 = inlined_call_operand.hbm [shape: f32[8,128], index: 8, kind: output, shape index: {}]
  %s9 = sld [smem:[#allocation0]]
  $region74: #{tpu_custom_call.1} parent=0
    _
  %s11 = ssub.s32 1, %s9
  %s12 = scalar_select 0, %s11, %s9
  $region1: #{tpu_custom_call.1} parent=0
    #allocation3 [shape = 'u8[512]{0}', space=vmem, size = 0x400, scoped, tag = 'input window, operand 0, single buffered']
    #allocation4 [shape = 's32[1]{0}', space=sflag, size = 0x4, scoped, tag = 'scoped memory for tpu_custom_call.1']
    #allocation5 [shape = 's32[1]{0}', space=sflag, size = 0x4, scoped, tag = 'scoped memory for tpu_custom_call.1']
    #allocation6 [shape = 'u8[32768]{0}', space=vmem, size = 0x8000, scoped, tag = 'input window, operand 1, single buffered']
    #allocation7 [shape = 's32[1]{0}', space=sflag, size = 0x4, scoped, tag = 'scoped memory for tpu_custom_call.1']
    #allocation8 [shape = 'u8[32768]{0}', space=vmem, size = 0x8000, scoped, tag = 'input window, operand 2, single buffered']
    #allocation9 [shape = 'u8[65536]{0}', space=vmem, size = 0x10000, scoped, tag = 'input window, operand 3, single buffered']
    #allocation10 [shape = 's32[1]{0}', space=sflag, size = 0x4, scoped, tag = 'scoped memory for tpu_custom_call.1']
    #allocation11 [shape = 'u8[524288]{0}', space=vmem, size = 0x80000, scoped, tag = 'input window, operand 4, single buffered']
    #allocation12 [shape = 'u8[65536]{0}', space=vmem, size = 0x10000, scoped, tag = 'input window, operand 6, single buffered']
    #allocation13 [shape = 's32[1]{0}', space=sflag, size = 0x4, scoped, tag = 'scoped memory for tpu_custom_call.1']
    #allocation14 [shape = 'u8[4096]{0}', space=vmem, size = 0x1000, scoped, tag = 'output window, operand 0, single buffered']
    %13 = vsyncpa [#allocation4], 0
    %14 = vsyncpa [#allocation7], 0
    %15 = vsyncpa [#allocation10], 0
    %16 = vsyncpa [#allocation13], 0
    %17 = vsyncpa [#allocation5], 0
    // Predicated region
    $region2: #{tpu_custom_call.1} parent=1 // pred_check
      _
    $region3: #{tpu_custom_call.1} parent=1 // pred_check_branch
      %19 = sbr.rel (0) target = $region5
    $region4: #{tpu_custom_call.1} parent=1 // pred_region
      %s21 = ssub.s32 16, 16
      %22 = vsyncadd [#allocation4], %s21
      %s24 = sshll.u32 [#allocation3], 4
      %s25 = int_to_ptr.vmem [resolvable:$true] %s24
      %27 = dma.hbm_to_vmem [thread:$0]  %s0, 16, %s25, [#allocation4]
    $region5: #{tpu_custom_call.1} parent=1 // pred_fallthru
      _
    // Predicated region
    $region6: #{tpu_custom_call.1} parent=1 // pred_check
      _
    $region7: #{tpu_custom_call.1} parent=1 // pred_check_branch
      %29 = sbr.rel (0) target = $region9
    $region8: #{tpu_custom_call.1} parent=1 // pred_region
      %s31 = ssub.s32 1024, 1024
      %32 = vsyncadd [#allocation7], %s31
      %s33 = sshll.u32 [#allocation6], 4
      %s34 = int_to_ptr.vmem [resolvable:$true] %s33
      %39 = dma.hbm_to_vmem [thread:$0]  %s1, 1024, %s34, [#allocation7], 64, 64, 4
    $region9: #{tpu_custom_call.1} parent=1 // pred_fallthru
      _
    // Predicated region
    $region10: #{tpu_custom_call.1} parent=1 // pred_check
      _
    $region11: #{tpu_custom_call.1} parent=1 // pred_check_branch
      %41 = sbr.rel (0) target = $region13
    $region12: #{tpu_custom_call.1} parent=1 // pred_region
      %s43 = ssub.s32 1024, 1024
      %44 = vsyncadd [#allocation7], %s43
      %s46 = sshll.u32 [#allocation8], 4
      %s47 = int_to_ptr.vmem [resolvable:$true] %s46
      %49 = dma.hbm_to_vmem [thread:$0]  %s2, 1024, %s47, [#allocation7]
    $region13: #{tpu_custom_call.1} parent=1 // pred_fallthru
      _
    // Predicated region
    $region14: #{tpu_custom_call.1} parent=1 // pred_check
      _
    $region15: #{tpu_custom_call.1} parent=1 // pred_check_branch
      %51 = sbr.rel (0) target = $region17
    $region16: #{tpu_custom_call.1} parent=1 // pred_region
      %s53 = ssub.s32 2048, 2048
      %54 = vsyncadd [#allocation10], %s53
      %s55 = sshll.u32 [#allocation9], 4
      %s56 = int_to_ptr.vmem [resolvable:$true] %s55
      %61 = dma.hbm_to_vmem [thread:$0]  %s3, 2048, %s56, [#allocation10], 128, 128, 8
    $region17: #{tpu_custom_call.1} parent=1 // pred_fallthru
      _
    // Predicated region
    $region18: #{tpu_custom_call.1} parent=1 // pred_check
      _
    $region19: #{tpu_custom_call.1} parent=1 // pred_check_branch
      %63 = sbr.rel (0) target = $region21
    $region20: #{tpu_custom_call.1} parent=1 // pred_region
      %s65 = ssub.s32 16384, 16384
      %66 = vsyncadd [#allocation10], %s65
      %s67 = sshll.u32 [#allocation11], 4
      %s68 = int_to_ptr.vmem [resolvable:$true] %s67
      %73 = dma.hbm_to_vmem [thread:$0]  %s4, 16384, %s68, [#allocation10], 64, 64, 4
    $region21: #{tpu_custom_call.1} parent=1 // pred_fallthru
      _
    // Predicated region
    $region22: #{tpu_custom_call.1} parent=1 // pred_check
      _
    $region23: #{tpu_custom_call.1} parent=1 // pred_check_branch
      %75 = sbr.rel (0) target = $region25
    $region24: #{tpu_custom_call.1} parent=1 // pred_region
      _
    $region25: #{tpu_custom_call.1} parent=1 // pred_fallthru
      _
    // Predicated region
    $region26: #{tpu_custom_call.1} parent=1 // pred_check
      _
    $region27: #{tpu_custom_call.1} parent=1 // pred_check_branch
      %77 = sbr.rel (0) target = $region29
    $region28: #{tpu_custom_call.1} parent=1 // pred_region
      %s79 = ssub.s32 2048, 2048
      %80 = vsyncadd [#allocation13], %s79
      %s81 = sshll.u32 [#allocation12], 4
      %s82 = int_to_ptr.vmem [resolvable:$true] %s81
      %87 = dma.hbm_to_vmem [thread:$0]  %s6, 2048, %s82, [#allocation13], 128, 128, 8
    $region29: #{tpu_custom_call.1} parent=1 // pred_fallthru
      _
    // Predicated region
    $region30: #{tpu_custom_call.1} parent=1 // pred_check
      _
    $region31: #{tpu_custom_call.1} parent=1 // pred_check_branch
      %89 = sbr.rel (0) target = $region33
    $region32: #{tpu_custom_call.1} parent=1 // pred_region
      _
    $region33: #{tpu_custom_call.1} parent=1 // pred_fallthru
      _
    // Predicated region
    $region34: #{tpu_custom_call.1} parent=1 // pred_check
      _
    $region35: #{tpu_custom_call.1} parent=1 // pred_check_branch
      %91 = sbr.rel (0) target = $region37
    $region36: #{tpu_custom_call.1} parent=1 // pred_region
      %92 = dma.done [#allocation4], 16
    $region37: #{tpu_custom_call.1} parent=1 // pred_fallthru
      _
    // Predicated region
    $region38: #{tpu_custom_call.1} parent=1 // pred_check
      _
    $region39: #{tpu_custom_call.1} parent=1 // pred_check_branch
      %94 = sbr.rel (0) target = $region41
    $region40: #{tpu_custom_call.1} parent=1 // pred_region
      %95 = dma.done [#allocation7], 1024
    $region41: #{tpu_custom_call.1} parent=1 // pred_fallthru
      _
    // Predicated region
    $region42: #{tpu_custom_call.1} parent=1 // pred_check
      _
    $region43: #{tpu_custom_call.1} parent=1 // pred_check_branch
      %97 = sbr.rel (0) target = $region45
    $region44: #{tpu_custom_call.1} parent=1 // pred_region
      %98 = dma.done [#allocation7], 1024
    $region45: #{tpu_custom_call.1} parent=1 // pred_fallthru
      _
    // Predicated region
    $region46: #{tpu_custom_call.1} parent=1 // pred_check
      _
    $region47: #{tpu_custom_call.1} parent=1 // pred_check_branch
      %100 = sbr.rel (0) target = $region49
    $region48: #{tpu_custom_call.1} parent=1 // pred_region
      %101 = dma.done [#allocation10], 2048
    $region49: #{tpu_custom_call.1} parent=1 // pred_fallthru
      _
    // Predicated region
    $region50: #{tpu_custom_call.1} parent=1 // pred_check
      _
    $region51: #{tpu_custom_call.1} parent=1 // pred_check_branch
      %103 = sbr.rel (0) target = $region53
    $region52: #{tpu_custom_call.1} parent=1 // pred_region
      %104 = dma.done [#allocation10], 16384
    $region53: #{tpu_custom_call.1} parent=1 // pred_fallthru
      _
    // Predicated region
    $region54: #{tpu_custom_call.1} parent=1 // pred_check
      _
    $region55: #{tpu_custom_call.1} parent=1 // pred_check_branch
      %106 = sbr.rel (0) target = $region57
    $region56: #{tpu_custom_call.1} parent=1 // pred_region
      %107 = dma.done [#allocation13], 2048
    $region57: #{tpu_custom_call.1} parent=1 // pred_fallthru
      _
    %p109 = scmp.eq.s32.totalorder 0, 0
    // Predicated region
    $region58: #{tpu_custom_call.1} parent=1 // pred_check
      %p110 = pneg %p109
    $region59: #{tpu_custom_call.1} parent=1 // pred_check_branch
      %112 = sbr.rel (%p110) target = $region61
    $region60: #{tpu_custom_call.1} parent=1 // pred_region
      %113 = vst [vmem:[#allocation2] sm:$0xff] 0.0
    $region61: #{tpu_custom_call.1} parent=1 // pred_fallthru
      _
    %v114 = vld [vmem:[#allocation3] sm:$0x1]
    %v115 = vlaneseq
    %v116 = vshrl.u32 %v115, 7
    %v117 = vlaneseq
    %v118 = vshrl.u32 %v117, 7
    %v119 = vsub.s32 0, %v118
    %v120 = vrot.slane %v114, %v119
    %vm121 = vcmp.eq.s32.totalorder %v116, %v120
    %v122 = vsel %vm121, 1, 0
    %v123 = vcvt.s32.f32 %v122
    %v124 = vpack.c.bf16 %v123, %v123
    %v125 = vld [vmem:[#allocation2] sm:$0xff]
    %v126 = vld [vmem:[#allocation6] sm:$0xf]
    %v127 = vld [vmem:[#allocation6 + $0x4] sm:$0xf]
    %v128 = vld [vmem:[#allocation6 + $0x8] sm:$0xf]
    %v129 = vld [vmem:[#allocation6 + $0xc] sm:$0xf]
    %v130 = vld [vmem:[#allocation6 + $0x10] sm:$0xf]
    %v131 = vld [vmem:[#allocation6 + $0x14] sm:$0xf]
    %v132 = vld [vmem:[#allocation6 + $0x18] sm:$0xf]
    %v133 = vld [vmem:[#allocation6 + $0x1c] sm:$0xf]
    %v134 = vld [vmem:[#allocation6 + $0x20] sm:$0xf]
    %v135 = vld [vmem:[#allocation6 + $0x24] sm:$0xf]
    %v136 = vld [vmem:[#allocation6 + $0x28] sm:$0xf]
    %v137 = vld [vmem:[#allocation6 + $0x2c] sm:$0xf]
    %v138 = vld [vmem:[#allocation6 + $0x30] sm:$0xf]
    %v139 = vld [vmem:[#allocation6 + $0x34] sm:$0xf]
    %v140 = vld [vmem:[#allocation6 + $0x38] sm:$0xf]
    %v141 = vld [vmem:[#allocation6 + $0x3c] sm:$0xf]
    %v158 = vunpack.c.l.b16 %v126
    %v159 = vunpack.c.l.b16 %v127
    %v160 = vunpack.c.l.b16 %v128
    %v161 = vunpack.c.l.b16 %v129
    %v162 = vunpack.c.l.b16 %v130
    %v163 = vunpack.c.l.b16 %v131
    %v164 = vunpack.c.l.b16 %v132
    %v165 = vunpack.c.l.b16 %v133
    %v166 = vunpack.c.l.b16 %v134
    %v167 = vunpack.c.l.b16 %v135
    %v168 = vunpack.c.l.b16 %v136
    %v169 = vunpack.c.l.b16 %v137
    %v170 = vunpack.c.l.b16 %v138
    %v171 = vunpack.c.l.b16 %v139
    %v172 = vunpack.c.l.b16 %v140
    %v173 = vunpack.c.l.b16 %v141
    %v174 = vpack.c.b16 %v159, %v158
    %v175 = vpack.c.b16 %v161, %v160
    %v176 = vpack.c.b16 %v163, %v162
    %v177 = vpack.c.b16 %v165, %v164
    %v178 = vpack.c.b16 %v167, %v166
    %v179 = vpack.c.b16 %v169, %v168
    %v180 = vpack.c.b16 %v171, %v170
    %v181 = vpack.c.b16 %v173, %v172
    %190 = vmatprep.subr.bf16.mxu0 0
    %191 = vmatpush1.bf16.msra.mxu0 %v181
    %192 = vmatprep.subr.bf16.mxu0 0
    %193 = vmatpush1.bf16.msra.mxu0 %v180
    %194 = vmatprep.subr.bf16.mxu0 0
    %195 = vmatpush1.bf16.msra.mxu0 %v179
    %196 = vmatprep.subr.bf16.mxu0 0
    %197 = vmatpush1.bf16.msra.mxu0 %v178
    %198 = vmatprep.subr.bf16.mxu0 0
    %199 = vmatpush1.bf16.msra.mxu0 %v177
    %200 = vmatprep.subr.bf16.mxu0 0
    %201 = vmatpush1.bf16.msra.mxu0 %v176
    %202 = vmatprep.subr.bf16.mxu0 0
    %203 = vmatpush1.bf16.msra.mxu0 %v175
    %204 = vmatprep.subr.bf16.mxu0 0
    %205 = vmatpush1.bf16.msra.mxu0 %v174
    %206 = vmatprep.subr.bf16.mxu0 0
    %207 = vmatpush2.bf16.msra.mxu0 0
    %208 = vmatprep.subr.bf16.mxu0 0
    %209 = vmatpush2.bf16.msra.mxu0 0
    %210 = vmatprep.subr.bf16.mxu0 0
    %211 = vmatpush2.bf16.msra.mxu0 0
    %212 = vmatprep.subr.bf16.mxu0 0
    %213 = vmatpush2.bf16.msra.mxu0 0
    %214 = vmatprep.subr.bf16.mxu0 0
    %215 = vmatpush2.bf16.msra.mxu0 0
    %216 = vmatprep.subr.bf16.mxu0 0
    %217 = vmatpush2.bf16.msra.mxu0 0
    %218 = vmatprep.subr.bf16.mxu0 0
    %219 = vmatpush2.bf16.msra.mxu0 0
    %220 = vmatprep.subr.bf16.mxu0 0
    %221 = vmatpush2.bf16.msra.mxu0 0
    %222 = vmatprep.mubr.bf16.mxu0 0
    %223 = vmatmul.mubr.bf16.gmra.mxu0 %v124
    %v224 = vpop.f32.mrf.mxu0
    %v225 = vadd.f32 0.0, %v224
    %v226 = vpop.f32.mrf.mxu0
    %v227 = vpop.f32.mrf.mxu0
    %v228 = vpop.f32.mrf.mxu0
    %229 = vdwg.mxu0
    %v230 = vadd.f32 %v125, %v225
    %231 = vst [vmem:[#allocation2] sm:$0xff] %v230
    // Predicated region
    $region62: #{tpu_custom_call.1} parent=1 // pred_check
      %p232 = pneg %p109
    $region63: #{tpu_custom_call.1} parent=1 // pred_check_branch
      %234 = sbr.rel (%p232) target = $region65
    $region64: #{tpu_custom_call.1} parent=1 // pred_region
      %v235 = vld [vmem:[#allocation2] sm:$0xff]
      %v236 = vld [vmem:[#allocation9] sm:$0xff]
      %v237 = vld [vmem:[#allocation9 + $0x8] sm:$0xff]
      %v238 = vld [vmem:[#allocation9 + $0x10] sm:$0xff]
      %v239 = vld [vmem:[#allocation9 + $0x18] sm:$0xff]
      %v240 = vld [vmem:[#allocation9 + $0x20] sm:$0xff]
      %v241 = vld [vmem:[#allocation9 + $0x28] sm:$0xff]
      %v242 = vld [vmem:[#allocation9 + $0x30] sm:$0xff]
      %v243 = vld [vmem:[#allocation9 + $0x38] sm:$0xff]
      %v244 = vld [vmem:[#allocation9 + $0x40] sm:$0xff]
      %v245 = vld [vmem:[#allocation9 + $0x48] sm:$0xff]
      %v246 = vld [vmem:[#allocation9 + $0x50] sm:$0xff]
      %v247 = vld [vmem:[#allocation9 + $0x58] sm:$0xff]
      %v248 = vld [vmem:[#allocation9 + $0x60] sm:$0xff]
      %v249 = vld [vmem:[#allocation9 + $0x68] sm:$0xff]
      %v250 = vld [vmem:[#allocation9 + $0x70] sm:$0xff]
      %v251 = vld [vmem:[#allocation9 + $0x78] sm:$0xff]
      %v252 = vld [vmem:[#allocation8] sm:$0xff]
      %v253 = vld [vmem:[#allocation8 + $0x8] sm:$0xff]
      %v254 = vld [vmem:[#allocation8 + $0x10] sm:$0xff]
      %v255 = vld [vmem:[#allocation8 + $0x18] sm:$0xff]
      %v256 = vld [vmem:[#allocation8 + $0x20] sm:$0xff]
      %v257 = vld [vmem:[#allocation8 + $0x28] sm:$0xff]
      %v258 = vld [vmem:[#allocation8 + $0x30] sm:$0xff]
      %v259 = vld [vmem:[#allocation8 + $0x38] sm:$0xff]
      %v260 = vld [vmem:[#allocation11] sm:$0xf]
      %v261 = vld [vmem:[#allocation11 + $0x4] sm:$0xf]
      %v262 = vld [vmem:[#allocation11 + $0x8] sm:$0xf]
      %v263 = vld [vmem:[#allocation11 + $0xc] sm:$0xf]
      %v264 = vld [vmem:[#allocation11 + $0x10] sm:$0xf]
      %v265 = vld [vmem:[#allocation11 + $0x14] sm:$0xf]
      %v266 = vld [vmem:[#allocation11 + $0x18] sm:$0xf]
      %v267 = vld [vmem:[#allocation11 + $0x1c] sm:$0xf]
      %v268 = vld [vmem:[#allocation11 + $0x20] sm:$0xf]
      %v269 = vld [vmem:[#allocation11 + $0x24] sm:$0xf]
      %v270 = vld [vmem:[#allocation11 + $0x28] sm:$0xf]
      %v271 = vld [vmem:[#allocation11 + $0x2c] sm:$0xf]
      %v272 = vld [vmem:[#allocation11 + $0x30] sm:$0xf]
      %v273 = vld [vmem:[#allocation11 + $0x34] sm:$0xf]
      %v274 = vld [vmem:[#allocation11 + $0x38] sm:$0xf]
      %v275 = vld [vmem:[#allocation11 + $0x3c] sm:$0xf]
      %v276 = vld [vmem:[#allocation11 + $0x40] sm:$0xf]
      %v277 = vld [vmem:[#allocation11 + $0x44] sm:$0xf]
      %v278 = vld [vmem:[#allocation11 + $0x48] sm:$0xf]
      %v279 = vld [vmem:[#allocation11 + $0x4c] sm:$0xf]
      %v280 = vld [vmem:[#allocation11 + $0x50] sm:$0xf]
      %v281 = vld [vmem:[#allocation11 + $0x54] sm:$0xf]
      %v282 = vld [vmem:[#allocation11 + $0x58] sm:$0xf]
      %v283 = vld [vmem:[#allocation11 + $0x5c] sm:$0xf]
      %v284 = vld [vmem:[#allocation11 + $0x60] sm:$0xf]
      %v285 = vld [vmem:[#allocation11 + $0x64] sm:$0xf]
      %v286 = vld [vmem:[#allocation11 + $0x68] sm:$0xf]
      %v287 = vld [vmem:[#allocation11 + $0x6c] sm:$0xf]
      %v288 = vld [vmem:[#allocation11 + $0x70] sm:$0xf]
      %v289 = vld [vmem:[#allocation11 + $0x74] sm:$0xf]
      %v290 = vld [vmem:[#allocation11 + $0x78] sm:$0xf]
      %v291 = vld [vmem:[#allocation11 + $0x7c] sm:$0xf]
      %v292 = vld [vmem:[#allocation11 + $0x80] sm:$0xf]
      %v293 = vld [vmem:[#allocation11 + $0x84] sm:$0xf]
      %v294 = vld [vmem:[#allocation11 + $0x88] sm:$0xf]
      %v295 = vld [vmem:[#allocation11 + $0x8c] sm:$0xf]
      %v296 = vld [vmem:[#allocation11 + $0x90] sm:$0xf]
      %v297 = vld [vmem:[#allocation11 + $0x94] sm:$0xf]
      %v298 = vld [vmem:[#allocation11 + $0x98] sm:$0xf]
      %v299 = vld [vmem:[#allocation11 + $0x9c] sm:$0xf]
      %v300 = vld [vmem:[#allocation11 + $0xa0] sm:$0xf]
      %v301 = vld [vmem:[#allocation11 + $0xa4] sm:$0xf]
      %v302 = vld [vmem:[#allocation11 + $0xa8] sm:$0xf]
      %v303 = vld [vmem:[#allocation11 + $0xac] sm:$0xf]
      %v304 = vld [vmem:[#allocation11 + $0xb0] sm:$0xf]
      %v305 = vld [vmem:[#allocation11 + $0xb4] sm:$0xf]
      %v306 = vld [vmem:[#allocation11 + $0xb8] sm:$0xf]
      %v307 = vld [vmem:[#allocation11 + $0xbc] sm:$0xf]
      %v308 = vld [vmem:[#allocation11 + $0xc0] sm:$0xf]
      %v309 = vld [vmem:[#allocation11 + $0xc4] sm:$0xf]
      %v310 = vld [vmem:[#allocation11 + $0xc8] sm:$0xf]
      %v311 = vld [vmem:[#allocation11 + $0xcc] sm:$0xf]
      %v312 = vld [vmem:[#allocation11 + $0xd0] sm:$0xf]
      %v313 = vld [vmem:[#allocation11 + $0xd4] sm:$0xf]
      %v314 = vld [vmem:[#allocation11 + $0xd8] sm:$0xf]
      %v315 = vld [vmem:[#allocation11 + $0xdc] sm:$0xf]
      %v316 = vld [vmem:[#allocation11 + $0xe0] sm:$0xf]
      %v317 = vld [vmem:[#allocation11 + $0xe4] sm:$0xf]
      %v318 = vld [vmem:[#allocation11 + $0xe8] sm:$0xf]
      %v319 = vld [vmem:[#allocation11 + $0xec] sm:$0xf]
      %v320 = vld [vmem:[#allocation11 + $0xf0] sm:$0xf]
      %v321 = vld [vmem:[#allocation11 + $0xf4] sm:$0xf]
      %v322 = vld [vmem:[#allocation11 + $0xf8] sm:$0xf]
      %v323 = vld [vmem:[#allocation11 + $0xfc] sm:$0xf]
      %v324 = vld [vmem:[#allocation11 + $0x100] sm:$0xf]
      %v325 = vld [vmem:[#allocation11 + $0x104] sm:$0xf]
      %v326 = vld [vmem:[#allocation11 + $0x108] sm:$0xf]
      %v327 = vld [vmem:[#allocation11 + $0x10c] sm:$0xf]
      %v328 = vld [vmem:[#allocation11 + $0x110] sm:$0xf]
      %v329 = vld [vmem:[#allocation11 + $0x114] sm:$0xf]
      %v330 = vld [vmem:[#allocation11 + $0x118] sm:$0xf]
      %v331 = vld [vmem:[#allocation11 + $0x11c] sm:$0xf]
      %v332 = vld [vmem:[#allocation11 + $0x120] sm:$0xf]
      %v333 = vld [vmem:[#allocation11 + $0x124] sm:$0xf]
      %v334 = vld [vmem:[#allocation11 + $0x128] sm:$0xf]
      %v335 = vld [vmem:[#allocation11 + $0x12c] sm:$0xf]
      %v336 = vld [vmem:[#allocation11 + $0x130] sm:$0xf]
      %v337 = vld [vmem:[#allocation11 + $0x134] sm:$0xf]
      %v338 = vld [vmem:[#allocation11 + $0x138] sm:$0xf]
      %v339 = vld [vmem:[#allocation11 + $0x13c] sm:$0xf]
      %v340 = vld [vmem:[#allocation11 + $0x140] sm:$0xf]
      %v341 = vld [vmem:[#allocation11 + $0x144] sm:$0xf]
      %v342 = vld [vmem:[#allocation11 + $0x148] sm:$0xf]
      %v343 = vld [vmem:[#allocation11 + $0x14c] sm:$0xf]
      %v344 = vld [vmem:[#allocation11 + $0x150] sm:$0xf]
      %v345 = vld [vmem:[#allocation11 + $0x154] sm:$0xf]
      %v346 = vld [vmem:[#allocation11 + $0x158] sm:$0xf]
      %v347 = vld [vmem:[#allocation11 + $0x15c] sm:$0xf]
      %v348 = vld [vmem:[#allocation11 + $0x160] sm:$0xf]
      %v349 = vld [vmem:[#allocation11 + $0x164] sm:$0xf]
      %v350 = vld [vmem:[#allocation11 + $0x168] sm:$0xf]
      %v351 = vld [vmem:[#allocation11 + $0x16c] sm:$0xf]
      %v352 = vld [vmem:[#allocation11 + $0x170] sm:$0xf]
      %v353 = vld [vmem:[#allocation11 + $0x174] sm:$0xf]
      %v354 = vld [vmem:[#allocation11 + $0x178] sm:$0xf]
      %v355 = vld [vmem:[#allocation11 + $0x17c] sm:$0xf]
      %v356 = vld [vmem:[#allocation11 + $0x180] sm:$0xf]
      %v357 = vld [vmem:[#allocation11 + $0x184] sm:$0xf]
      %v358 = vld [vmem:[#allocation11 + $0x188] sm:$0xf]
      %v359 = vld [vmem:[#allocation11 + $0x18c] sm:$0xf]
      %v360 = vld [vmem:[#allocation11 + $0x190] sm:$0xf]
      %v361 = vld [vmem:[#allocation11 + $0x194] sm:$0xf]
      %v362 = vld [vmem:[#allocation11 + $0x198] sm:$0xf]
      %v363 = vld [vmem:[#allocation11 + $0x19c] sm:$0xf]
      %v364 = vld [vmem:[#allocation11 + $0x1a0] sm:$0xf]
      %v365 = vld [vmem:[#allocation11 + $0x1a4] sm:$0xf]
      %v366 = vld [vmem:[#allocation11 + $0x1a8] sm:$0xf]
      %v367 = vld [vmem:[#allocation11 + $0x1ac] sm:$0xf]
      %v368 = vld [vmem:[#allocation11 + $0x1b0] sm:$0xf]
      %v369 = vld [vmem:[#allocation11 + $0x1b4] sm:$0xf]
      %v370 = vld [vmem:[#allocation11 + $0x1b8] sm:$0xf]
      %v371 = vld [vmem:[#allocation11 + $0x1bc] sm:$0xf]
      %v372 = vld [vmem:[#allocation11 + $0x1c0] sm:$0xf]
      %v373 = vld [vmem:[#allocation11 + $0x1c4] sm:$0xf]
      %v374 = vld [vmem:[#allocation11 + $0x1c8] sm:$0xf]
      %v375 = vld [vmem:[#allocation11 + $0x1cc] sm:$0xf]
      %v376 = vld [vmem:[#allocation11 + $0x1d0] sm:$0xf]
      %v377 = vld [vmem:[#allocation11 + $0x1d4] sm:$0xf]
      %v378 = vld [vmem:[#allocation11 + $0x1d8] sm:$0xf]
      %v379 = vld [vmem:[#allocation11 + $0x1dc] sm:$0xf]
      %v380 = vld [vmem:[#allocation11 + $0x1e0] sm:$0xf]
      %v381 = vld [vmem:[#allocation11 + $0x1e4] sm:$0xf]
      %v382 = vld [vmem:[#allocation11 + $0x1e8] sm:$0xf]
      %v383 = vld [vmem:[#allocation11 + $0x1ec] sm:$0xf]
      %v384 = vld [vmem:[#allocation11 + $0x1f0] sm:$0xf]
      %v385 = vld [vmem:[#allocation11 + $0x1f4] sm:$0xf]
      %v386 = vld [vmem:[#allocation11 + $0x1f8] sm:$0xf]
      %v387 = vld [vmem:[#allocation11 + $0x1fc] sm:$0xf]
      %v388 = vld [vmem:[#allocation11 + $0x200] sm:$0xf]
      %v389 = vld [vmem:[#allocation11 + $0x204] sm:$0xf]
      %v390 = vld [vmem:[#allocation11 + $0x208] sm:$0xf]
      %v391 = vld [vmem:[#allocation11 + $0x20c] sm:$0xf]
      %v392 = vld [vmem:[#allocation11 + $0x210] sm:$0xf]
      %v393 = vld [vmem:[#allocation11 + $0x214] sm:$0xf]
      %v394 = vld [vmem:[#allocation11 + $0x218] sm:$0xf]
      %v395 = vld [vmem:[#allocation11 + $0x21c] sm:$0xf]
      %v396 = vld [vmem:[#allocation11 + $0x220] sm:$0xf]
      %v397 = vld [vmem:[#allocation11 + $0x224] sm:$0xf]
      %v398 = vld [vmem:[#allocation11 + $0x228] sm:$0xf]
      %v399 = vld [vmem:[#allocation11 + $0x22c] sm:$0xf]
      %v400 = vld [vmem:[#allocation11 + $0x230] sm:$0xf]
      %v401 = vld [vmem:[#allocation11 + $0x234] sm:$0xf]
      %v402 = vld [vmem:[#allocation11 + $0x238] sm:$0xf]
      %v403 = vld [vmem:[#allocation11 + $0x23c] sm:$0xf]
      %v404 = vld [vmem:[#allocation11 + $0x240] sm:$0xf]
      %v405 = vld [vmem:[#allocation11 + $0x244] sm:$0xf]
      %v406 = vld [vmem:[#allocation11 + $0x248] sm:$0xf]
      %v407 = vld [vmem:[#allocation11 + $0x24c] sm:$0xf]
      %v408 = vld [vmem:[#allocation11 + $0x250] sm:$0xf]
      %v409 = vld [vmem:[#allocation11 + $0x254] sm:$0xf]
      %v410 = vld [vmem:[#allocation11 + $0x258] sm:$0xf]
      %v411 = vld [vmem:[#allocation11 + $0x25c] sm:$0xf]
      %v412 = vld [vmem:[#allocation11 + $0x260] sm:$0xf]
      %v413 = vld [vmem:[#allocation11 + $0x264] sm:$0xf]
      %v414 = vld [vmem:[#allocation11 + $0x268] sm:$0xf]
      %v415 = vld [vmem:[#allocation11 + $0x26c] sm:$0xf]
      %v416 = vld [vmem:[#allocation11 + $0x270] sm:$0xf]
      %v417 = vld [vmem:[#allocation11 + $0x274] sm:$0xf]
      %v418 = vld [vmem:[#allocation11 + $0x278] sm:$0xf]
      %v419 = vld [vmem:[#allocation11 + $0x27c] sm:$0xf]
      %v420 = vld [vmem:[#allocation11 + $0x280] sm:$0xf]
      %v421 = vld [vmem:[#allocation11 + $0x284] sm:$0xf]
      %v422 = vld [vmem:[#allocation11 + $0x288] sm:$0xf]
      %v423 = vld [vmem:[#allocation11 + $0x28c] sm:$0xf]
      %v424 = vld [vmem:[#allocation11 + $0x290] sm:$0xf]
      %v425 = vld [vmem:[#allocation11 + $0x294] sm:$0xf]
      %v426 = vld [vmem:[#allocation11 + $0x298] sm:$0xf]
      %v427 = vld [vmem:[#allocation11 + $0x29c] sm:$0xf]
      %v428 = vld [vmem:[#allocation11 + $0x2a0] sm:$0xf]
      %v429 = vld [vmem:[#allocation11 + $0x2a4] sm:$0xf]
      %v430 = vld [vmem:[#allocation11 + $0x2a8] sm:$0xf]
      %v431 = vld [vmem:[#allocation11 + $0x2ac] sm:$0xf]
      %v432 = vld [vmem:[#allocation11 + $0x2b0] sm:$0xf]
      %v433 = vld [vmem:[#allocation11 + $0x2b4] sm:$0xf]
      %v434 = vld [vmem:[#allocation11 + $0x2b8] sm:$0xf]
      %v435 = vld [vmem:[#allocation11 + $0x2bc] sm:$0xf]
      %v436 = vld [vmem:[#allocation11 + $0x2c0] sm:$0xf]
      %v437 = vld [vmem:[#allocation11 + $0x2c4] sm:$0xf]
      %v438 = vld [vmem:[#allocation11 + $0x2c8] sm:$0xf]
      %v439 = vld [vmem:[#allocation11 + $0x2cc] sm:$0xf]
      %v440 = vld [vmem:[#allocation11 + $0x2d0] sm:$0xf]
      %v441 = vld [vmem:[#allocation11 + $0x2d4] sm:$0xf]
      %v442 = vld [vmem:[#allocation11 + $0x2d8] sm:$0xf]
      %v443 = vld [vmem:[#allocation11 + $0x2dc] sm:$0xf]
      %v444 = vld [vmem:[#allocation11 + $0x2e0] sm:$0xf]
      %v445 = vld [vmem:[#allocation11 + $0x2e4] sm:$0xf]
      %v446 = vld [vmem:[#allocation11 + $0x2e8] sm:$0xf]
      %v447 = vld [vmem:[#allocation11 + $0x2ec] sm:$0xf]
      %v448 = vld [vmem:[#allocation11 + $0x2f0] sm:$0xf]
      %v449 = vld [vmem:[#allocation11 + $0x2f4] sm:$0xf]
      %v450 = vld [vmem:[#allocation11 + $0x2f8] sm:$0xf]
      %v451 = vld [vmem:[#allocation11 + $0x2fc] sm:$0xf]
      %v452 = vld [vmem:[#allocation11 + $0x300] sm:$0xf]
      %v453 = vld [vmem:[#allocation11 + $0x304] sm:$0xf]
      %v454 = vld [vmem:[#allocation11 + $0x308] sm:$0xf]
      %v455 = vld [vmem:[#allocation11 + $0x30c] sm:$0xf]
      %v456 = vld [vmem:[#allocation11 + $0x310] sm:$0xf]
      %v457 = vld [vmem:[#allocation11 + $0x314] sm:$0xf]
      %v458 = vld [vmem:[#allocation11 + $0x318] sm:$0xf]
      %v459 = vld [vmem:[#allocation11 + $0x31c] sm:$0xf]
      %v460 = vld [vmem:[#allocation11 + $0x320] sm:$0xf]
      %v461 = vld [vmem:[#allocation11 + $0x324] sm:$0xf]
      %v462 = vld [vmem:[#allocation11 + $0x328] sm:$0xf]
      %v463 = vld [vmem:[#allocation11 + $0x32c] sm:$0xf]
      %v464 = vld [vmem:[#allocation11 + $0x330] sm:$0xf]
      %v465 = vld [vmem:[#allocation11 + $0x334] sm:$0xf]
      %v466 = vld [vmem:[#allocation11 + $0x338] sm:$0xf]
      %v467 = vld [vmem:[#allocation11 + $0x33c] sm:$0xf]
      %v468 = vld [vmem:[#allocation11 + $0x340] sm:$0xf]
      %v469 = vld [vmem:[#allocation11 + $0x344] sm:$0xf]
      %v470 = vld [vmem:[#allocation11 + $0x348] sm:$0xf]
      %v471 = vld [vmem:[#allocation11 + $0x34c] sm:$0xf]
      %v472 = vld [vmem:[#allocation11 + $0x350] sm:$0xf]
      %v473 = vld [vmem:[#allocation11 + $0x354] sm:$0xf]
      %v474 = vld [vmem:[#allocation11 + $0x358] sm:$0xf]
      %v475 = vld [vmem:[#allocation11 + $0x35c] sm:$0xf]
      %v476 = vld [vmem:[#allocation11 + $0x360] sm:$0xf]
      %v477 = vld [vmem:[#allocation11 + $0x364] sm:$0xf]
      %v478 = vld [vmem:[#allocation11 + $0x368] sm:$0xf]
      %v479 = vld [vmem:[#allocation11 + $0x36c] sm:$0xf]
      %v480 = vld [vmem:[#allocation11 + $0x370] sm:$0xf]
      %v481 = vld [vmem:[#allocation11 + $0x374] sm:$0xf]
      %v482 = vld [vmem:[#allocation11 + $0x378] sm:$0xf]
      %v483 = vld [vmem:[#allocation11 + $0x37c] sm:$0xf]
      %v484 = vld [vmem:[#allocation11 + $0x380] sm:$0xf]
      %v485 = vld [vmem:[#allocation11 + $0x384] sm:$0xf]
      %v486 = vld [vmem:[#allocation11 + $0x388] sm:$0xf]
      %v487 = vld [vmem:[#allocation11 + $0x38c] sm:$0xf]
      %v488 = vld [vmem:[#allocation11 + $0x390] sm:$0xf]
      %v489 = vld [vmem:[#allocation11 + $0x394] sm:$0xf]
      %v490 = vld [vmem:[#allocation11 + $0x398] sm:$0xf]
      %v491 = vld [vmem:[#allocation11 + $0x39c] sm:$0xf]
      %v492 = vld [vmem:[#allocation11 + $0x3a0] sm:$0xf]
      %v493 = vld [vmem:[#allocation11 + $0x3a4] sm:$0xf]
      %v494 = vld [vmem:[#allocation11 + $0x3a8] sm:$0xf]
      %v495 = vld [vmem:[#allocation11 + $0x3ac] sm:$0xf]
      %v496 = vld [vmem:[#allocation11 + $0x3b0] sm:$0xf]
      %v497 = vld [vmem:[#allocation11 + $0x3b4] sm:$0xf]
      %v498 = vld [vmem:[#allocation11 + $0x3b8] sm:$0xf]
      %v499 = vld [vmem:[#allocation11 + $0x3bc] sm:$0xf]
      %v500 = vld [vmem:[#allocation11 + $0x3c0] sm:$0xf]
      %v501 = vld [vmem:[#allocation11 + $0x3c4] sm:$0xf]
      %v502 = vld [vmem:[#allocation11 + $0x3c8] sm:$0xf]
      %v503 = vld [vmem:[#allocation11 + $0x3cc] sm:$0xf]
      %v504 = vld [vmem:[#allocation11 + $0x3d0] sm:$0xf]
      %v505 = vld [vmem:[#allocation11 + $0x3d4] sm:$0xf]
      %v506 = vld [vmem:[#allocation11 + $0x3d8] sm:$0xf]
      %v507 = vld [vmem:[#allocation11 + $0x3dc] sm:$0xf]
      %v508 = vld [vmem:[#allocation11 + $0x3e0] sm:$0xf]
      %v509 = vld [vmem:[#allocation11 + $0x3e4] sm:$0xf]
      %v510 = vld [vmem:[#allocation11 + $0x3e8] sm:$0xf]
      %v511 = vld [vmem:[#allocation11 + $0x3ec] sm:$0xf]
      %v512 = vld [vmem:[#allocation11 + $0x3f0] sm:$0xf]
      %v513 = vld [vmem:[#allocation11 + $0x3f4] sm:$0xf]
      %v514 = vld [vmem:[#allocation11 + $0x3f8] sm:$0xf]
      %v515 = vld [vmem:[#allocation11 + $0x3fc] sm:$0xf]
      %v524 = vunpack.c.l.b16 %v252
      %v525 = vunpack.c.h.b16 %v252
      %v526 = vunpack.c.l.b16 %v253
      %v527 = vunpack.c.h.b16 %v253
      %v528 = vunpack.c.l.b16 %v254
      %v529 = vunpack.c.h.b16 %v254
      %v530 = vunpack.c.l.b16 %v255
      %v531 = vunpack.c.h.b16 %v255
      %v532 = vunpack.c.l.b16 %v256
      %v533 = vunpack.c.h.b16 %v256
      %v534 = vunpack.c.l.b16 %v257
      %v535 = vunpack.c.h.b16 %v257
      %v536 = vunpack.c.l.b16 %v258
      %v537 = vunpack.c.h.b16 %v258
      %v538 = vunpack.c.l.b16 %v259
      %v539 = vunpack.c.h.b16 %v259
      %v540 = vpack.c.b16 %v524, %v524
      %v541 = vpack.c.b16 %v525, %v525
      %v542 = vpack.c.b16 %v526, %v526
      %v543 = vpack.c.b16 %v527, %v527
      %v544 = vpack.c.b16 %v528, %v528
      %v545 = vpack.c.b16 %v529, %v529
      %v546 = vpack.c.b16 %v530, %v530
      %v547 = vpack.c.b16 %v531, %v531
      %v548 = vpack.c.b16 %v532, %v532
      %v549 = vpack.c.b16 %v533, %v533
      %v550 = vpack.c.b16 %v534, %v534
      %v551 = vpack.c.b16 %v535, %v535
      %v552 = vpack.c.b16 %v536, %v536
      %v553 = vpack.c.b16 %v537, %v537
      %v554 = vpack.c.b16 %v538, %v538
      %v555 = vpack.c.b16 %v539, %v539
      %v828 = vunpack.c.l.b16 %v260
      %v829 = vunpack.c.l.b16 %v261
      %v830 = vunpack.c.l.b16 %v262
      %v831 = vunpack.c.l.b16 %v263
      %v832 = vunpack.c.l.b16 %v264
      %v833 = vunpack.c.l.b16 %v265
      %v834 = vunpack.c.l.b16 %v266
      %v835 = vunpack.c.l.b16 %v267
      %v836 = vunpack.c.l.b16 %v268
      %v837 = vunpack.c.l.b16 %v269
      %v838 = vunpack.c.l.b16 %v270
      %v839 = vunpack.c.l.b16 %v271
      %v840 = vunpack.c.l.b16 %v272
      %v841 = vunpack.c.l.b16 %v273
      %v842 = vunpack.c.l.b16 %v274
      %v843 = vunpack.c.l.b16 %v275
      %v844 = vunpack.c.l.b16 %v276
      %v845 = vunpack.c.l.b16 %v277
      %v846 = vunpack.c.l.b16 %v278
      %v847 = vunpack.c.l.b16 %v279
      %v848 = vunpack.c.l.b16 %v280
      %v849 = vunpack.c.l.b16 %v281
      %v850 = vunpack.c.l.b16 %v282
      %v851 = vunpack.c.l.b16 %v283
      %v852 = vunpack.c.l.b16 %v284
      %v853 = vunpack.c.l.b16 %v285
      %v854 = vunpack.c.l.b16 %v286
      %v855 = vunpack.c.l.b16 %v287
      %v856 = vunpack.c.l.b16 %v288
      %v857 = vunpack.c.l.b16 %v289
      %v858 = vunpack.c.l.b16 %v290
      %v859 = vunpack.c.l.b16 %v291
      %v860 = vunpack.c.l.b16 %v292
      %v861 = vunpack.c.l.b16 %v293
      %v862 = vunpack.c.l.b16 %v294
      %v863 = vunpack.c.l.b16 %v295
      %v864 = vunpack.c.l.b16 %v296
      %v865 = vunpack.c.l.b16 %v297
      %v866 = vunpack.c.l.b16 %v298
      %v867 = vunpack.c.l.b16 %v299
      %v868 = vunpack.c.l.b16 %v300
      %v869 = vunpack.c.l.b16 %v301
      %v870 = vunpack.c.l.b16 %v302
      %v871 = vunpack.c.l.b16 %v303
      %v872 = vunpack.c.l.b16 %v304
      %v873 = vunpack.c.l.b16 %v305
      %v874 = vunpack.c.l.b16 %v306
      %v875 = vunpack.c.l.b16 %v307
      %v876 = vunpack.c.l.b16 %v308
      %v877 = vunpack.c.l.b16 %v309
      %v878 = vunpack.c.l.b16 %v310
      %v879 = vunpack.c.l.b16 %v311
      %v880 = vunpack.c.l.b16 %v312
      %v881 = vunpack.c.l.b16 %v313
      %v882 = vunpack.c.l.b16 %v314
      %v883 = vunpack.c.l.b16 %v315
      %v884 = vunpack.c.l.b16 %v316
      %v885 = vunpack.c.l.b16 %v317
      %v886 = vunpack.c.l.b16 %v318
      %v887 = vunpack.c.l.b16 %v319
      %v888 = vunpack.c.l.b16 %v320
      %v889 = vunpack.c.l.b16 %v321
      %v890 = vunpack.c.l.b16 %v322
      %v891 = vunpack.c.l.b16 %v323
      %v892 = vunpack.c.l.b16 %v324
      %v893 = vunpack.c.l.b16 %v325
      %v894 = vunpack.c.l.b16 %v326
      %v895 = vunpack.c.l.b16 %v327
      %v896 = vunpack.c.l.b16 %v328
      %v897 = vunpack.c.l.b16 %v329
      %v898 = vunpack.c.l.b16 %v330
      %v899 = vunpack.c.l.b16 %v331
      %v900 = vunpack.c.l.b16 %v332
      %v901 = vunpack.c.l.b16 %v333
      %v902 = vunpack.c.l.b16 %v334
      %v903 = vunpack.c.l.b16 %v335
      %v904 = vunpack.c.l.b16 %v336
      %v905 = vunpack.c.l.b16 %v337
      %v906 = vunpack.c.l.b16 %v338
      %v907 = vunpack.c.l.b16 %v339
      %v908 = vunpack.c.l.b16 %v340
      %v909 = vunpack.c.l.b16 %v341
      %v910 = vunpack.c.l.b16 %v342
      %v911 = vunpack.c.l.b16 %v343
      %v912 = vunpack.c.l.b16 %v344
      %v913 = vunpack.c.l.b16 %v345
      %v914 = vunpack.c.l.b16 %v346
      %v915 = vunpack.c.l.b16 %v347
      %v916 = vunpack.c.l.b16 %v348
      %v917 = vunpack.c.l.b16 %v349
      %v918 = vunpack.c.l.b16 %v350
      %v919 = vunpack.c.l.b16 %v351
      %v920 = vunpack.c.l.b16 %v352
      %v921 = vunpack.c.l.b16 %v353
      %v922 = vunpack.c.l.b16 %v354
      %v923 = vunpack.c.l.b16 %v355
      %v924 = vunpack.c.l.b16 %v356
      %v925 = vunpack.c.l.b16 %v357
      %v926 = vunpack.c.l.b16 %v358
      %v927 = vunpack.c.l.b16 %v359
      %v928 = vunpack.c.l.b16 %v360
      %v929 = vunpack.c.l.b16 %v361
      %v930 = vunpack.c.l.b16 %v362
      %v931 = vunpack.c.l.b16 %v363
      %v932 = vunpack.c.l.b16 %v364
      %v933 = vunpack.c.l.b16 %v365
      %v934 = vunpack.c.l.b16 %v366
      %v935 = vunpack.c.l.b16 %v367
      %v936 = vunpack.c.l.b16 %v368
      %v937 = vunpack.c.l.b16 %v369
      %v938 = vunpack.c.l.b16 %v370
      %v939 = vunpack.c.l.b16 %v371
      %v940 = vunpack.c.l.b16 %v372
      %v941 = vunpack.c.l.b16 %v373
      %v942 = vunpack.c.l.b16 %v374
      %v943 = vunpack.c.l.b16 %v375
      %v944 = vunpack.c.l.b16 %v376
      %v945 = vunpack.c.l.b16 %v377
      %v946 = vunpack.c.l.b16 %v378
      %v947 = vunpack.c.l.b16 %v379
      %v948 = vunpack.c.l.b16 %v380
      %v949 = vunpack.c.l.b16 %v381
      %v950 = vunpack.c.l.b16 %v382
      %v951 = vunpack.c.l.b16 %v383
      %v952 = vunpack.c.l.b16 %v384
      %v953 = vunpack.c.l.b16 %v385
      %v954 = vunpack.c.l.b16 %v386
      %v955 = vunpack.c.l.b16 %v387
      %v956 = vunpack.c.l.b16 %v388
      %v957 = vunpack.c.l.b16 %v389
      %v958 = vunpack.c.l.b16 %v390
      %v959 = vunpack.c.l.b16 %v391
      %v960 = vunpack.c.l.b16 %v392
      %v961 = vunpack.c.l.b16 %v393
      %v962 = vunpack.c.l.b16 %v394
      %v963 = vunpack.c.l.b16 %v395
      %v964 = vunpack.c.l.b16 %v396
      %v965 = vunpack.c.l.b16 %v397
      %v966 = vunpack.c.l.b16 %v398
      %v967 = vunpack.c.l.b16 %v399
      %v968 = vunpack.c.l.b16 %v400
      %v969 = vunpack.c.l.b16 %v401
      %v970 = vunpack.c.l.b16 %v402
      %v971 = vunpack.c.l.b16 %v403
      %v972 = vunpack.c.l.b16 %v404
      %v973 = vunpack.c.l.b16 %v405
      %v974 = vunpack.c.l.b16 %v406
      %v975 = vunpack.c.l.b16 %v407
      %v976 = vunpack.c.l.b16 %v408
      %v977 = vunpack.c.l.b16 %v409
      %v978 = vunpack.c.l.b16 %v410
      %v979 = vunpack.c.l.b16 %v411
      %v980 = vunpack.c.l.b16 %v412
      %v981 = vunpack.c.l.b16 %v413
      %v982 = vunpack.c.l.b16 %v414
      %v983 = vunpack.c.l.b16 %v415
      %v984 = vunpack.c.l.b16 %v416
      %v985 = vunpack.c.l.b16 %v417
      %v986 = vunpack.c.l.b16 %v418
      %v987 = vunpack.c.l.b16 %v419
      %v988 = vunpack.c.l.b16 %v420
      %v989 = vunpack.c.l.b16 %v421
      %v990 = vunpack.c.l.b16 %v422
      %v991 = vunpack.c.l.b16 %v423
      %v992 = vunpack.c.l.b16 %v424
      %v993 = vunpack.c.l.b16 %v425
      %v994 = vunpack.c.l.b16 %v426
      %v995 = vunpack.c.l.b16 %v427
      %v996 = vunpack.c.l.b16 %v428
      %v997 = vunpack.c.l.b16 %v429
      %v998 = vunpack.c.l.b16 %v430
      %v999 = vunpack.c.l.b16 %v431
      %v1000 = vunpack.c.l.b16 %v432
      %v1001 = vunpack.c.l.b16 %v433
      %v1002 = vunpack.c.l.b16 %v434
      %v1003 = vunpack.c.l.b16 %v435
      %v1004 = vunpack.c.l.b16 %v436
      %v1005 = vunpack.c.l.b16 %v437
      %v1006 = vunpack.c.l.b16 %v438
      %v1007 = vunpack.c.l.b16 %v439
      %v1008 = vunpack.c.l.b16 %v440
      %v1009 = vunpack.c.l.b16 %v441
      %v1010 = vunpack.c.l.b16 %v442
      %v1011 = vunpack.c.l.b16 %v443
      %v1012 = vunpack.c.l.b16 %v444
      %v1013 = vunpack.c.l.b16 %v445
      %v1014 = vunpack.c.l.b16 %v446
      %v1015 = vunpack.c.l.b16 %v447
      %v1016 = vunpack.c.l.b16 %v448
      %v1017 = vunpack.c.l.b16 %v449
      %v1018 = vunpack.c.l.b16 %v450
      %v1019 = vunpack.c.l.b16 %v451
      %v1020 = vunpack.c.l.b16 %v452
      %v1021 = vunpack.c.l.b16 %v453
      %v1022 = vunpack.c.l.b16 %v454
      %v1023 = vunpack.c.l.b16 %v455
      %v1024 = vunpack.c.l.b16 %v456
      %v1025 = vunpack.c.l.b16 %v457
      %v1026 = vunpack.c.l.b16 %v458
      %v1027 = vunpack.c.l.b16 %v459
      %v1028 = vunpack.c.l.b16 %v460
      %v1029 = vunpack.c.l.b16 %v461
      %v1030 = vunpack.c.l.b16 %v462
      %v1031 = vunpack.c.l.b16 %v463
      %v1032 = vunpack.c.l.b16 %v464
      %v1033 = vunpack.c.l.b16 %v465
      %v1034 = vunpack.c.l.b16 %v466
      %v1035 = vunpack.c.l.b16 %v467
      %v1036 = vunpack.c.l.b16 %v468
      %v1037 = vunpack.c.l.b16 %v469
      %v1038 = vunpack.c.l.b16 %v470
      %v1039 = vunpack.c.l.b16 %v471
      %v1040 = vunpack.c.l.b16 %v472
      %v1041 = vunpack.c.l.b16 %v473
      %v1042 = vunpack.c.l.b16 %v474
      %v1043 = vunpack.c.l.b16 %v475
      %v1044 = vunpack.c.l.b16 %v476
      %v1045 = vunpack.c.l.b16 %v477
      %v1046 = vunpack.c.l.b16 %v478
      %v1047 = vunpack.c.l.b16 %v479
      %v1048 = vunpack.c.l.b16 %v480
      %v1049 = vunpack.c.l.b16 %v481
      %v1050 = vunpack.c.l.b16 %v482
      %v1051 = vunpack.c.l.b16 %v483
      %v1052 = vunpack.c.l.b16 %v484
      %v1053 = vunpack.c.l.b16 %v485
      %v1054 = vunpack.c.l.b16 %v486
      %v1055 = vunpack.c.l.b16 %v487
      %v1056 = vunpack.c.l.b16 %v488
      %v1057 = vunpack.c.l.b16 %v489
      %v1058 = vunpack.c.l.b16 %v490
      %v1059 = vunpack.c.l.b16 %v491
      %v1060 = vunpack.c.l.b16 %v492
      %v1061 = vunpack.c.l.b16 %v493
      %v1062 = vunpack.c.l.b16 %v494
      %v1063 = vunpack.c.l.b16 %v495
      %v1064 = vunpack.c.l.b16 %v496
      %v1065 = vunpack.c.l.b16 %v497
      %v1066 = vunpack.c.l.b16 %v498
      %v1067 = vunpack.c.l.b16 %v499
      %v1068 = vunpack.c.l.b16 %v500
      %v1069 = vunpack.c.l.b16 %v501
      %v1070 = vunpack.c.l.b16 %v502
      %v1071 = vunpack.c.l.b16 %v503
      %v1072 = vunpack.c.l.b16 %v504
      %v1073 = vunpack.c.l.b16 %v505
      %v1074 = vunpack.c.l.b16 %v506
      %v1075 = vunpack.c.l.b16 %v507
      %v1076 = vunpack.c.l.b16 %v508
      %v1077 = vunpack.c.l.b16 %v509
      %v1078 = vunpack.c.l.b16 %v510
      %v1079 = vunpack.c.l.b16 %v511
      %v1080 = vunpack.c.l.b16 %v512
      %v1081 = vunpack.c.l.b16 %v513
      %v1082 = vunpack.c.l.b16 %v514
      %v1083 = vunpack.c.l.b16 %v515
      %v1084 = vpack.c.b16 %v829, %v828
      %v1085 = vpack.c.b16 %v831, %v830
      %v1086 = vpack.c.b16 %v833, %v832
      %v1087 = vpack.c.b16 %v835, %v834
      %v1088 = vpack.c.b16 %v837, %v836
      %v1089 = vpack.c.b16 %v839, %v838
      %v1090 = vpack.c.b16 %v841, %v840
      %v1091 = vpack.c.b16 %v843, %v842
      %v1092 = vpack.c.b16 %v845, %v844
      %v1093 = vpack.c.b16 %v847, %v846
      %v1094 = vpack.c.b16 %v849, %v848
      %v1095 = vpack.c.b16 %v851, %v850
      %v1096 = vpack.c.b16 %v853, %v852
      %v1097 = vpack.c.b16 %v855, %v854
      %v1098 = vpack.c.b16 %v857, %v856
      %v1099 = vpack.c.b16 %v859, %v858
      %v1100 = vpack.c.b16 %v861, %v860
      %v1101 = vpack.c.b16 %v863, %v862
      %v1102 = vpack.c.b16 %v865, %v864
      %v1103 = vpack.c.b16 %v867, %v866
      %v1104 = vpack.c.b16 %v869, %v868
      %v1105 = vpack.c.b16 %v871, %v870
      %v1106 = vpack.c.b16 %v873, %v872
      %v1107 = vpack.c.b16 %v875, %v874
      %v1108 = vpack.c.b16 %v877, %v876
      %v1109 = vpack.c.b16 %v879, %v878
      %v1110 = vpack.c.b16 %v881, %v880
      %v1111 = vpack.c.b16 %v883, %v882
      %v1112 = vpack.c.b16 %v885, %v884
      %v1113 = vpack.c.b16 %v887, %v886
      %v1114 = vpack.c.b16 %v889, %v888
      %v1115 = vpack.c.b16 %v891, %v890
      %v1116 = vpack.c.b16 %v893, %v892
      %v1117 = vpack.c.b16 %v895, %v894
      %v1118 = vpack.c.b16 %v897, %v896
      %v1119 = vpack.c.b16 %v899, %v898
      %v1120 = vpack.c.b16 %v901, %v900
      %v1121 = vpack.c.b16 %v903, %v902
      %v1122 = vpack.c.b16 %v905, %v904
      %v1123 = vpack.c.b16 %v907, %v906
      %v1124 = vpack.c.b16 %v909, %v908
      %v1125 = vpack.c.b16 %v911, %v910
      %v1126 = vpack.c.b16 %v913, %v912
      %v1127 = vpack.c.b16 %v915, %v914
      %v1128 = vpack.c.b16 %v917, %v916
      %v1129 = vpack.c.b16 %v919, %v918
      %v1130 = vpack.c.b16 %v921, %v920
      %v1131 = vpack.c.b16 %v923, %v922
      %v1132 = vpack.c.b16 %v925, %v924
      %v1133 = vpack.c.b16 %v927, %v926
      %v1134 = vpack.c.b16 %v929, %v928
      %v1135 = vpack.c.b16 %v931, %v930
      %v1136 = vpack.c.b16 %v933, %v932
      %v1137 = vpack.c.b16 %v935, %v934
      %v1138 = vpack.c.b16 %v937, %v936
      %v1139 = vpack.c.b16 %v939, %v938
      %v1140 = vpack.c.b16 %v941, %v940
      %v1141 = vpack.c.b16 %v943, %v942
      %v1142 = vpack.c.b16 %v945, %v944
      %v1143 = vpack.c.b16 %v947, %v946
      %v1144 = vpack.c.b16 %v949, %v948
      %v1145 = vpack.c.b16 %v951, %v950
      %v1146 = vpack.c.b16 %v953, %v952
      %v1147 = vpack.c.b16 %v955, %v954
      %v1148 = vpack.c.b16 %v957, %v956
      %v1149 = vpack.c.b16 %v959, %v958
      %v1150 = vpack.c.b16 %v961, %v960
      %v1151 = vpack.c.b16 %v963, %v962
      %v1152 = vpack.c.b16 %v965, %v964
      %v1153 = vpack.c.b16 %v967, %v966
      %v1154 = vpack.c.b16 %v969, %v968
      %v1155 = vpack.c.b16 %v971, %v970
      %v1156 = vpack.c.b16 %v973, %v972
      %v1157 = vpack.c.b16 %v975, %v974
      %v1158 = vpack.c.b16 %v977, %v976
      %v1159 = vpack.c.b16 %v979, %v978
      %v1160 = vpack.c.b16 %v981, %v980
      %v1161 = vpack.c.b16 %v983, %v982
      %v1162 = vpack.c.b16 %v985, %v984
      %v1163 = vpack.c.b16 %v987, %v986
      %v1164 = vpack.c.b16 %v989, %v988
      %v1165 = vpack.c.b16 %v991, %v990
      %v1166 = vpack.c.b16 %v993, %v992
      %v1167 = vpack.c.b16 %v995, %v994
      %v1168 = vpack.c.b16 %v997, %v996
      %v1169 = vpack.c.b16 %v999, %v998
      %v1170 = vpack.c.b16 %v1001, %v1000
      %v1171 = vpack.c.b16 %v1003, %v1002
      %v1172 = vpack.c.b16 %v1005, %v1004
      %v1173 = vpack.c.b16 %v1007, %v1006
      %v1174 = vpack.c.b16 %v1009, %v1008
      %v1175 = vpack.c.b16 %v1011, %v1010
      %v1176 = vpack.c.b16 %v1013, %v1012
      %v1177 = vpack.c.b16 %v1015, %v1014
      %v1178 = vpack.c.b16 %v1017, %v1016
      %v1179 = vpack.c.b16 %v1019, %v1018
      %v1180 = vpack.c.b16 %v1021, %v1020
      %v1181 = vpack.c.b16 %v1023, %v1022
      %v1182 = vpack.c.b16 %v1025, %v1024
      %v1183 = vpack.c.b16 %v1027, %v1026
      %v1184 = vpack.c.b16 %v1029, %v1028
      %v1185 = vpack.c.b16 %v1031, %v1030
      %v1186 = vpack.c.b16 %v1033, %v1032
      %v1187 = vpack.c.b16 %v1035, %v1034
      %v1188 = vpack.c.b16 %v1037, %v1036
      %v1189 = vpack.c.b16 %v1039, %v1038
      %v1190 = vpack.c.b16 %v1041, %v1040
      %v1191 = vpack.c.b16 %v1043, %v1042
      %v1192 = vpack.c.b16 %v1045, %v1044
      %v1193 = vpack.c.b16 %v1047, %v1046
      %v1194 = vpack.c.b16 %v1049, %v1048
      %v1195 = vpack.c.b16 %v1051, %v1050
      %v1196 = vpack.c.b16 %v1053, %v1052
      %v1197 = vpack.c.b16 %v1055, %v1054
      %v1198 = vpack.c.b16 %v1057, %v1056
      %v1199 = vpack.c.b16 %v1059, %v1058
      %v1200 = vpack.c.b16 %v1061, %v1060
      %v1201 = vpack.c.b16 %v1063, %v1062
      %v1202 = vpack.c.b16 %v1065, %v1064
      %v1203 = vpack.c.b16 %v1067, %v1066
      %v1204 = vpack.c.b16 %v1069, %v1068
      %v1205 = vpack.c.b16 %v1071, %v1070
      %v1206 = vpack.c.b16 %v1073, %v1072
      %v1207 = vpack.c.b16 %v1075, %v1074
      %v1208 = vpack.c.b16 %v1077, %v1076
      %v1209 = vpack.c.b16 %v1079, %v1078
      %v1210 = vpack.c.b16 %v1081, %v1080
      %v1211 = vpack.c.b16 %v1083, %v1082
      %1340 = vmatprep.subr.bf16.mxu0 0
      %1341 = vmatpush1.bf16.msra.mxu0 %v1091
      %1342 = vmatprep.subr.bf16.mxu0 0
      %1343 = vmatpush1.bf16.msra.mxu0 %v1090
      %1344 = vmatprep.subr.bf16.mxu0 0
      %1345 = vmatpush1.bf16.msra.mxu0 %v1089
      %1346 = vmatprep.subr.bf16.mxu0 0
      %1347 = vmatpush1.bf16.msra.mxu0 %v1088
      %1348 = vmatprep.subr.bf16.mxu0 0
      %1349 = vmatpush1.bf16.msra.mxu0 %v1087
      %1350 = vmatprep.subr.bf16.mxu0 0
      %1351 = vmatpush1.bf16.msra.mxu0 %v1086
      %1352 = vmatprep.subr.bf16.mxu0 0
      %1353 = vmatpush1.bf16.msra.mxu0 %v1085
      %1354 = vmatprep.subr.bf16.mxu0 0
      %1355 = vmatpush1.bf16.msra.mxu0 %v1084
      %1356 = vmatprep.subr.bf16.mxu0 0
      %1357 = vmatpush2.bf16.msra.mxu0 %v1099
      %1358 = vmatprep.subr.bf16.mxu0 0
      %1359 = vmatpush2.bf16.msra.mxu0 %v1098
      %1360 = vmatprep.subr.bf16.mxu0 0
      %1361 = vmatpush2.bf16.msra.mxu0 %v1097
      %1362 = vmatprep.subr.bf16.mxu0 0
      %1363 = vmatpush2.bf16.msra.mxu0 %v1096
      %1364 = vmatprep.subr.bf16.mxu0 0
      %1365 = vmatpush2.bf16.msra.mxu0 %v1095
      %1366 = vmatprep.subr.bf16.mxu0 0
      %1367 = vmatpush2.bf16.msra.mxu0 %v1094
      %1368 = vmatprep.subr.bf16.mxu0 0
      %1369 = vmatpush2.bf16.msra.mxu0 %v1093
      %1370 = vmatprep.subr.bf16.mxu0 0
      %1371 = vmatpush2.bf16.msra.mxu0 %v1092
      %1372 = vmatprep.mubr.bf16.mxu0 %v541
      %1373 = vmatmul.mubr.bf16.gmra.mxu0 %v540
      %v1374 = vpop.f32.mrf.mxu0
      %v1375 = vadd.f32 0.0, %v1374
      %v1376 = vpop.f32.mrf.mxu0
      %v1377 = vpop.f32.mrf.mxu0
      %v1378 = vpop.f32.mrf.mxu0
      %1379 = vdwg.mxu0
      %1380 = vmatprep.subr.bf16.mxu0 0
      %1381 = vmatpush1.bf16.msra.mxu0 %v1107
      %1382 = vmatprep.subr.bf16.mxu0 0
      %1383 = vmatpush1.bf16.msra.mxu0 %v1106
      %1384 = vmatprep.subr.bf16.mxu0 0
      %1385 = vmatpush1.bf16.msra.mxu0 %v1105
      %1386 = vmatprep.subr.bf16.mxu0 0
      %1387 = vmatpush1.bf16.msra.mxu0 %v1104
      %1388 = vmatprep.subr.bf16.mxu0 0
      %1389 = vmatpush1.bf16.msra.mxu0 %v1103
      %1390 = vmatprep.subr.bf16.mxu0 0
      %1391 = vmatpush1.bf16.msra.mxu0 %v1102
      %1392 = vmatprep.subr.bf16.mxu0 0
      %1393 = vmatpush1.bf16.msra.mxu0 %v1101
      %1394 = vmatprep.subr.bf16.mxu0 0
      %1395 = vmatpush1.bf16.msra.mxu0 %v1100
      %1396 = vmatprep.subr.bf16.mxu0 0
      %1397 = vmatpush2.bf16.msra.mxu0 %v1115
      %1398 = vmatprep.subr.bf16.mxu0 0
      %1399 = vmatpush2.bf16.msra.mxu0 %v1114
      %1400 = vmatprep.subr.bf16.mxu0 0
      %1401 = vmatpush2.bf16.msra.mxu0 %v1113
      %1402 = vmatprep.subr.bf16.mxu0 0
      %1403 = vmatpush2.bf16.msra.mxu0 %v1112
      %1404 = vmatprep.subr.bf16.mxu0 0
      %1405 = vmatpush2.bf16.msra.mxu0 %v1111
      %1406 = vmatprep.subr.bf16.mxu0 0
      %1407 = vmatpush2.bf16.msra.mxu0 %v1110
      %1408 = vmatprep.subr.bf16.mxu0 0
      %1409 = vmatpush2.bf16.msra.mxu0 %v1109
      %1410 = vmatprep.subr.bf16.mxu0 0
      %1411 = vmatpush2.bf16.msra.mxu0 %v1108
      %1412 = vmatprep.mubr.bf16.mxu0 %v543
      %1413 = vmatmul.mubr.bf16.gmra.mxu0 %v542
      %v1414 = vpop.f32.mrf.mxu0
      %v1415 = vadd.f32 %v1375, %v1414
      %v1416 = vpop.f32.mrf.mxu0
      %v1417 = vpop.f32.mrf.mxu0
      %v1418 = vpop.f32.mrf.mxu0
      %1419 = vdwg.mxu0
      %1420 = vmatprep.subr.bf16.mxu0 0
      %1421 = vmatpush1.bf16.msra.mxu0 %v1123
      %1422 = vmatprep.subr.bf16.mxu0 0
      %1423 = vmatpush1.bf16.msra.mxu0 %v1122
      %1424 = vmatprep.subr.bf16.mxu0 0
      %1425 = vmatpush1.bf16.msra.mxu0 %v1121
      %1426 = vmatprep.subr.bf16.mxu0 0
      %1427 = vmatpush1.bf16.msra.mxu0 %v1120
      %1428 = vmatprep.subr.bf16.mxu0 0
      %1429 = vmatpush1.bf16.msra.mxu0 %v1119
      %1430 = vmatprep.subr.bf16.mxu0 0
      %1431 = vmatpush1.bf16.msra.mxu0 %v1118
      %1432 = vmatprep.subr.bf16.mxu0 0
      %1433 = vmatpush1.bf16.msra.mxu0 %v1117
      %1434 = vmatprep.subr.bf16.mxu0 0
      %1435 = vmatpush1.bf16.msra.mxu0 %v1116
      %1436 = vmatprep.subr.bf16.mxu0 0
      %1437 = vmatpush2.bf16.msra.mxu0 %v1131
      %1438 = vmatprep.subr.bf16.mxu0 0
      %1439 = vmatpush2.bf16.msra.mxu0 %v1130
      %1440 = vmatprep.subr.bf16.mxu0 0
      %1441 = vmatpush2.bf16.msra.mxu0 %v1129
      %1442 = vmatprep.subr.bf16.mxu0 0
      %1443 = vmatpush2.bf16.msra.mxu0 %v1128
      %1444 = vmatprep.subr.bf16.mxu0 0
      %1445 = vmatpush2.bf16.msra.mxu0 %v1127
      %1446 = vmatprep.subr.bf16.mxu0 0
      %1447 = vmatpush2.bf16.msra.mxu0 %v1126
      %1448 = vmatprep.subr.bf16.mxu0 0
      %1449 = vmatpush2.bf16.msra.mxu0 %v1125
      %1450 = vmatprep.subr.bf16.mxu0 0
      %1451 = vmatpush2.bf16.msra.mxu0 %v1124
      %1452 = vmatprep.mubr.bf16.mxu0 %v545
      %1453 = vmatmul.mubr.bf16.gmra.mxu0 %v544
      %v1454 = vpop.f32.mrf.mxu0
      %v1455 = vadd.f32 %v1415, %v1454
      %v1456 = vpop.f32.mrf.mxu0
      %v1457 = vpop.f32.mrf.mxu0
      %v1458 = vpop.f32.mrf.mxu0
      %1459 = vdwg.mxu0
      %1460 = vmatprep.subr.bf16.mxu0 0
      %1461 = vmatpush1.bf16.msra.mxu0 %v1139
      %1462 = vmatprep.subr.bf16.mxu0 0
      %1463 = vmatpush1.bf16.msra.mxu0 %v1138
      %1464 = vmatprep.subr.bf16.mxu0 0
      %1465 = vmatpush1.bf16.msra.mxu0 %v1137
      %1466 = vmatprep.subr.bf16.mxu0 0
      %1467 = vmatpush1.bf16.msra.mxu0 %v1136
      %1468 = vmatprep.subr.bf16.mxu0 0
      %1469 = vmatpush1.bf16.msra.mxu0 %v1135
      %1470 = vmatprep.subr.bf16.mxu0 0
      %1471 = vmatpush1.bf16.msra.mxu0 %v1134
      %1472 = vmatprep.subr.bf16.mxu0 0
      %1473 = vmatpush1.bf16.msra.mxu0 %v1133
      %1474 = vmatprep.subr.bf16.mxu0 0
      %1475 = vmatpush1.bf16.msra.mxu0 %v1132
      %1476 = vmatprep.subr.bf16.mxu0 0
      %1477 = vmatpush2.bf16.msra.mxu0 %v1147
      %1478 = vmatprep.subr.bf16.mxu0 0
      %1479 = vmatpush2.bf16.msra.mxu0 %v1146
      %1480 = vmatprep.subr.bf16.mxu0 0
      %1481 = vmatpush2.bf16.msra.mxu0 %v1145
      %1482 = vmatprep.subr.bf16.mxu0 0
      %1483 = vmatpush2.bf16.msra.mxu0 %v1144
      %1484 = vmatprep.subr.bf16.mxu0 0
      %1485 = vmatpush2.bf16.msra.mxu0 %v1143
      %1486 = vmatprep.subr.bf16.mxu0 0
      %1487 = vmatpush2.bf16.msra.mxu0 %v1142
      %1488 = vmatprep.subr.bf16.mxu0 0
      %1489 = vmatpush2.bf16.msra.mxu0 %v1141
      %1490 = vmatprep.subr.bf16.mxu0 0
      %1491 = vmatpush2.bf16.msra.mxu0 %v1140
      %1492 = vmatprep.mubr.bf16.mxu0 %v547
      %1493 = vmatmul.mubr.bf16.gmra.mxu0 %v546
      %v1494 = vpop.f32.mrf.mxu0
      %v1495 = vadd.f32 %v1455, %v1494
      %v1496 = vpop.f32.mrf.mxu0
      %v1497 = vpop.f32.mrf.mxu0
      %v1498 = vpop.f32.mrf.mxu0
      %1499 = vdwg.mxu0
      %1500 = vmatprep.subr.bf16.mxu0 0
      %1501 = vmatpush1.bf16.msra.mxu0 %v1155
      %1502 = vmatprep.subr.bf16.mxu0 0
      %1503 = vmatpush1.bf16.msra.mxu0 %v1154
      %1504 = vmatprep.subr.bf16.mxu0 0
      %1505 = vmatpush1.bf16.msra.mxu0 %v1153
      %1506 = vmatprep.subr.bf16.mxu0 0
      %1507 = vmatpush1.bf16.msra.mxu0 %v1152
      %1508 = vmatprep.subr.bf16.mxu0 0
      %1509 = vmatpush1.bf16.msra.mxu0 %v1151
      %1510 = vmatprep.subr.bf16.mxu0 0
      %1511 = vmatpush1.bf16.msra.mxu0 %v1150
      %1512 = vmatprep.subr.bf16.mxu0 0
      %1513 = vmatpush1.bf16.msra.mxu0 %v1149
      %1514 = vmatprep.subr.bf16.mxu0 0
      %1515 = vmatpush1.bf16.msra.mxu0 %v1148
      %1516 = vmatprep.subr.bf16.mxu0 0
      %1517 = vmatpush2.bf16.msra.mxu0 %v1163
      %1518 = vmatprep.subr.bf16.mxu0 0
      %1519 = vmatpush2.bf16.msra.mxu0 %v1162
      %1520 = vmatprep.subr.bf16.mxu0 0
      %1521 = vmatpush2.bf16.msra.mxu0 %v1161
      %1522 = vmatprep.subr.bf16.mxu0 0
      %1523 = vmatpush2.bf16.msra.mxu0 %v1160
      %1524 = vmatprep.subr.bf16.mxu0 0
      %1525 = vmatpush2.bf16.msra.mxu0 %v1159
      %1526 = vmatprep.subr.bf16.mxu0 0
      %1527 = vmatpush2.bf16.msra.mxu0 %v1158
      %1528 = vmatprep.subr.bf16.mxu0 0
      %1529 = vmatpush2.bf16.msra.mxu0 %v1157
      %1530 = vmatprep.subr.bf16.mxu0 0
      %1531 = vmatpush2.bf16.msra.mxu0 %v1156
      %1532 = vmatprep.mubr.bf16.mxu0 %v549
      %1533 = vmatmul.mubr.bf16.gmra.mxu0 %v548
      %v1534 = vpop.f32.mrf.mxu0
      %v1535 = vadd.f32 %v1495, %v1534
      %v1536 = vpop.f32.mrf.mxu0
      %v1537 = vpop.f32.mrf.mxu0
      %v1538 = vpop.f32.mrf.mxu0
      %1539 = vdwg.mxu0
      %1540 = vmatprep.subr.bf16.mxu0 0
      %1541 = vmatpush1.bf16.msra.mxu0 %v1171
      %1542 = vmatprep.subr.bf16.mxu0 0
      %1543 = vmatpush1.bf16.msra.mxu0 %v1170
      %1544 = vmatprep.subr.bf16.mxu0 0
      %1545 = vmatpush1.bf16.msra.mxu0 %v1169
      %1546 = vmatprep.subr.bf16.mxu0 0
      %1547 = vmatpush1.bf16.msra.mxu0 %v1168
      %1548 = vmatprep.subr.bf16.mxu0 0
      %1549 = vmatpush1.bf16.msra.mxu0 %v1167
      %1550 = vmatprep.subr.bf16.mxu0 0
      %1551 = vmatpush1.bf16.msra.mxu0 %v1166
      %1552 = vmatprep.subr.bf16.mxu0 0
      %1553 = vmatpush1.bf16.msra.mxu0 %v1165
      %1554 = vmatprep.subr.bf16.mxu0 0
      %1555 = vmatpush1.bf16.msra.mxu0 %v1164
      %1556 = vmatprep.subr.bf16.mxu0 0
      %1557 = vmatpush2.bf16.msra.mxu0 %v1179
      %1558 = vmatprep.subr.bf16.mxu0 0
      %1559 = vmatpush2.bf16.msra.mxu0 %v1178
      %1560 = vmatprep.subr.bf16.mxu0 0
      %1561 = vmatpush2.bf16.msra.mxu0 %v1177
      %1562 = vmatprep.subr.bf16.mxu0 0
      %1563 = vmatpush2.bf16.msra.mxu0 %v1176
      %1564 = vmatprep.subr.bf16.mxu0 0
      %1565 = vmatpush2.bf16.msra.mxu0 %v1175
      %1566 = vmatprep.subr.bf16.mxu0 0
      %1567 = vmatpush2.bf16.msra.mxu0 %v1174
      %1568 = vmatprep.subr.bf16.mxu0 0
      %1569 = vmatpush2.bf16.msra.mxu0 %v1173
      %1570 = vmatprep.subr.bf16.mxu0 0
      %1571 = vmatpush2.bf16.msra.mxu0 %v1172
      %1572 = vmatprep.mubr.bf16.mxu0 %v551
      %1573 = vmatmul.mubr.bf16.gmra.mxu0 %v550
      %v1574 = vpop.f32.mrf.mxu0
      %v1575 = vadd.f32 %v1535, %v1574
      %v1576 = vpop.f32.mrf.mxu0
      %v1577 = vpop.f32.mrf.mxu0
      %v1578 = vpop.f32.mrf.mxu0
      %1579 = vdwg.mxu0
      %1580 = vmatprep.subr.bf16.mxu0 0
      %1581 = vmatpush1.bf16.msra.mxu0 %v1187
      %1582 = vmatprep.subr.bf16.mxu0 0
      %1583 = vmatpush1.bf16.msra.mxu0 %v1186
      %1584 = vmatprep.subr.bf16.mxu0 0
      %1585 = vmatpush1.bf16.msra.mxu0 %v1185
      %1586 = vmatprep.subr.bf16.mxu0 0
      %1587 = vmatpush1.bf16.msra.mxu0 %v1184
      %1588 = vmatprep.subr.bf16.mxu0 0
      %1589 = vmatpush1.bf16.msra.mxu0 %v1183
      %1590 = vmatprep.subr.bf16.mxu0 0
      %1591 = vmatpush1.bf16.msra.mxu0 %v1182
      %1592 = vmatprep.subr.bf16.mxu0 0
      %1593 = vmatpush1.bf16.msra.mxu0 %v1181
      %1594 = vmatprep.subr.bf16.mxu0 0
      %1595 = vmatpush1.bf16.msra.mxu0 %v1180
      %1596 = vmatprep.subr.bf16.mxu0 0
      %1597 = vmatpush2.bf16.msra.mxu0 %v1195
      %1598 = vmatprep.subr.bf16.mxu0 0
      %1599 = vmatpush2.bf16.msra.mxu0 %v1194
      %1600 = vmatprep.subr.bf16.mxu0 0
      %1601 = vmatpush2.bf16.msra.mxu0 %v1193
      %1602 = vmatprep.subr.bf16.mxu0 0
      %1603 = vmatpush2.bf16.msra.mxu0 %v1192
      %1604 = vmatprep.subr.bf16.mxu0 0
      %1605 = vmatpush2.bf16.msra.mxu0 %v1191
      %1606 = vmatprep.subr.bf16.mxu0 0
      %1607 = vmatpush2.bf16.msra.mxu0 %v1190
      %1608 = vmatprep.subr.bf16.mxu0 0
      %1609 = vmatpush2.bf16.msra.mxu0 %v1189
      %1610 = vmatprep.subr.bf16.mxu0 0
      %1611 = vmatpush2.bf16.msra.mxu0 %v1188
      %1612 = vmatprep.mubr.bf16.mxu0 %v553
      %1613 = vmatmul.mubr.bf16.gmra.mxu0 %v552
      %v1614 = vpop.f32.mrf.mxu0
      %v1615 = vadd.f32 %v1575, %v1614
      %v1616 = vpop.f32.mrf.mxu0
      %v1617 = vpop.f32.mrf.mxu0
      %v1618 = vpop.f32.mrf.mxu0
      %1619 = vdwg.mxu0
      %1620 = vmatprep.subr.bf16.mxu0 0
      %1621 = vmatpush1.bf16.msra.mxu0 %v1203
      %1622 = vmatprep.subr.bf16.mxu0 0
      %1623 = vmatpush1.bf16.msra.mxu0 %v1202
      %1624 = vmatprep.subr.bf16.mxu0 0
      %1625 = vmatpush1.bf16.msra.mxu0 %v1201
      %1626 = vmatprep.subr.bf16.mxu0 0
      %1627 = vmatpush1.bf16.msra.mxu0 %v1200
      %1628 = vmatprep.subr.bf16.mxu0 0
      %1629 = vmatpush1.bf16.msra.mxu0 %v1199
      %1630 = vmatprep.subr.bf16.mxu0 0
      %1631 = vmatpush1.bf16.msra.mxu0 %v1198
      %1632 = vmatprep.subr.bf16.mxu0 0
      %1633 = vmatpush1.bf16.msra.mxu0 %v1197
      %1634 = vmatprep.subr.bf16.mxu0 0
      %1635 = vmatpush1.bf16.msra.mxu0 %v1196
      %1636 = vmatprep.subr.bf16.mxu0 0
      %1637 = vmatpush2.bf16.msra.mxu0 %v1211
      %1638 = vmatprep.subr.bf16.mxu0 0
      %1639 = vmatpush2.bf16.msra.mxu0 %v1210
      %1640 = vmatprep.subr.bf16.mxu0 0
      %1641 = vmatpush2.bf16.msra.mxu0 %v1209
      %1642 = vmatprep.subr.bf16.mxu0 0
      %1643 = vmatpush2.bf16.msra.mxu0 %v1208
      %1644 = vmatprep.subr.bf16.mxu0 0
      %1645 = vmatpush2.bf16.msra.mxu0 %v1207
      %1646 = vmatprep.subr.bf16.mxu0 0
      %1647 = vmatpush2.bf16.msra.mxu0 %v1206
      %1648 = vmatprep.subr.bf16.mxu0 0
      %1649 = vmatpush2.bf16.msra.mxu0 %v1205
      %1650 = vmatprep.subr.bf16.mxu0 0
      %1651 = vmatpush2.bf16.msra.mxu0 %v1204
      %1652 = vmatprep.mubr.bf16.mxu0 %v555
      %1653 = vmatmul.mubr.bf16.gmra.mxu0 %v554
      %v1654 = vpop.f32.mrf.mxu0
      %v1655 = vadd.f32 %v1615, %v1654
      %v1656 = vpop.f32.mrf.mxu0
      %v1657 = vpop.f32.mrf.mxu0
      %v1658 = vpop.f32.mrf.mxu0
      %1659 = vdwg.mxu0
      %1660 = vmatprep.subr.mxu0 0.0
      %1661 = vmatpush1.msra.mxu0 %v251
      %1662 = vmatprep.subr.mxu0 0.0
      %1663 = vmatpush1.msra.mxu0 %v250
      %1664 = vmatprep.subr.mxu0 0.0
      %1665 = vmatpush1.msra.mxu0 %v249
      %1666 = vmatprep.subr.mxu0 0.0
      %1667 = vmatpush1.msra.mxu0 %v248
      %1668 = vmatprep.subr.mxu0 0.0
      %1669 = vmatpush1.msra.mxu0 %v247
      %1670 = vmatprep.subr.mxu0 0.0
      %1671 = vmatpush1.msra.mxu0 %v246
      %1672 = vmatprep.subr.mxu0 0.0
      %1673 = vmatpush1.msra.mxu0 %v245
      %1674 = vmatprep.subr.mxu0 0.0
      %1675 = vmatpush1.msra.mxu0 %v244
      %1676 = vmatprep.subr.mxu0 0.0
      %1677 = vmatpush1.msra.mxu0 %v243
      %1678 = vmatprep.subr.mxu0 0.0
      %1679 = vmatpush1.msra.mxu0 %v242
      %1680 = vmatprep.subr.mxu0 0.0
      %1681 = vmatpush1.msra.mxu0 %v241
      %1682 = vmatprep.subr.mxu0 0.0
      %1683 = vmatpush1.msra.mxu0 %v240
      %1684 = vmatprep.subr.mxu0 0.0
      %1685 = vmatpush1.msra.mxu0 %v239
      %1686 = vmatprep.subr.mxu0 0.0
      %1687 = vmatpush1.msra.mxu0 %v238
      %1688 = vmatprep.subr.mxu0 0.0
      %1689 = vmatpush1.msra.mxu0 %v237
      %1690 = vmatprep.subr.mxu0 0.0
      %1691 = vmatpush1.msra.mxu0 %v236
      %1692 = vmatprep.subr.mxu0 0.0
      %1693 = vmatpush2.msra.mxu0 0.0
      %1694 = vmatprep.subr.mxu0 0.0
      %1695 = vmatpush2.msra.mxu0 0.0
      %1696 = vmatprep.subr.mxu0 0.0
      %1697 = vmatpush2.msra.mxu0 0.0
      %1698 = vmatprep.subr.mxu0 0.0
      %1699 = vmatpush2.msra.mxu0 0.0
      %1700 = vmatprep.subr.mxu0 0.0
      %1701 = vmatpush2.msra.mxu0 0.0
      %1702 = vmatprep.subr.mxu0 0.0
      %1703 = vmatpush2.msra.mxu0 0.0
      %1704 = vmatprep.subr.mxu0 0.0
      %1705 = vmatpush2.msra.mxu0 0.0
      %1706 = vmatprep.subr.mxu0 0.0
      %1707 = vmatpush2.msra.mxu0 0.0
      %1708 = vmatprep.subr.mxu0 0.0
      %1709 = vmatpush2.msra.mxu0 0.0
      %1710 = vmatprep.subr.mxu0 0.0
      %1711 = vmatpush2.msra.mxu0 0.0
      %1712 = vmatprep.subr.mxu0 0.0
      %1713 = vmatpush2.msra.mxu0 0.0
      %1714 = vmatprep.subr.mxu0 0.0
      %1715 = vmatpush2.msra.mxu0 0.0
      %1716 = vmatprep.subr.mxu0 0.0
      %1717 = vmatpush2.msra.mxu0 0.0
      %1718 = vmatprep.subr.mxu0 0.0
      %1719 = vmatpush2.msra.mxu0 0.0
      %1720 = vmatprep.subr.mxu0 0.0
      %1721 = vmatpush2.msra.mxu0 0.0
      %1722 = vmatprep.subr.mxu0 0.0
      %1723 = vmatpush2.msra.mxu0 0.0
      %1724 = vmatprep.mubr.f32.mxu0 0.0
      %1725 = vmatmul.mubr.f32.gmra.mxu0 %v235
      %v1726 = vpop.f32.mrf.mxu0
      %v1727 = vadd.f32 %v1655, %v1726
      %v1728 = vpop.f32.mrf.mxu0
      %1729 = vdwg.mxu0
      %v1730 = vld [vmem:[%s5] sm:$0x1]
      %v1732 = vlaneseq
      %v1733 = vshrl.u32 %v1732, 7
      %v1734 = vsub.s32 0, %v1733
      %v1735 = vrot.slane %v1730, %v1734
      %v1737 = vadd.f32 %v1727, %v1735
      %v1738 = vmul.f32 %v1737, 0.5
      %v1739 = vmul.f32 %v1737, 0.70710677
      %v1740 = verf.f32.pop %v1739
      %v1741 = vadd.f32 %v1740, 1.0
      %v1742 = vmul.f32 %v1738, %v1741
      %v1743 = vld [vmem:[#allocation12] sm:$0xff]
      %v1744 = vld [vmem:[#allocation12 + $0x8] sm:$0xff]
      %v1745 = vld [vmem:[#allocation12 + $0x10] sm:$0xff]
      %v1746 = vld [vmem:[#allocation12 + $0x18] sm:$0xff]
      %v1747 = vld [vmem:[#allocation12 + $0x20] sm:$0xff]
      %v1748 = vld [vmem:[#allocation12 + $0x28] sm:$0xff]
      %v1749 = vld [vmem:[#allocation12 + $0x30] sm:$0xff]
      %v1750 = vld [vmem:[#allocation12 + $0x38] sm:$0xff]
      %v1751 = vld [vmem:[#allocation12 + $0x40] sm:$0xff]
      %v1752 = vld [vmem:[#allocation12 + $0x48] sm:$0xff]
      %v1753 = vld [vmem:[#allocation12 + $0x50] sm:$0xff]
      %v1754 = vld [vmem:[#allocation12 + $0x58] sm:$0xff]
      %v1755 = vld [vmem:[#allocation12 + $0x60] sm:$0xff]
      %v1756 = vld [vmem:[#allocation12 + $0x68] sm:$0xff]
      %v1757 = vld [vmem:[#allocation12 + $0x70] sm:$0xff]
      %v1758 = vld [vmem:[#allocation12 + $0x78] sm:$0xff]
      %v1759 = vld [vmem:[%s7] sm:$0x1]
      %v1761 = vlaneseq
      %v1762 = vshrl.u32 %v1761, 7
      %v1763 = vsub.s32 0, %v1762
      %v1764 = vrot.slane %v1759, %v1763
      %1766 = vmatprep.subr.mxu0 0.0
      %1767 = vmatpush1.msra.mxu0 %v1758
      %1768 = vmatprep.subr.mxu0 0.0
      %1769 = vmatpush1.msra.mxu0 %v1757
      %1770 = vmatprep.subr.mxu0 0.0
      %1771 = vmatpush1.msra.mxu0 %v1756
      %1772 = vmatprep.subr.mxu0 0.0
      %1773 = vmatpush1.msra.mxu0 %v1755
      %1774 = vmatprep.subr.mxu0 0.0
      %1775 = vmatpush1.msra.mxu0 %v1754
      %1776 = vmatprep.subr.mxu0 0.0
      %1777 = vmatpush1.msra.mxu0 %v1753
      %1778 = vmatprep.subr.mxu0 0.0
      %1779 = vmatpush1.msra.mxu0 %v1752
      %1780 = vmatprep.subr.mxu0 0.0
      %1781 = vmatpush1.msra.mxu0 %v1751
      %1782 = vmatprep.subr.mxu0 0.0
      %1783 = vmatpush1.msra.mxu0 %v1750
      %1784 = vmatprep.subr.mxu0 0.0
      %1785 = vmatpush1.msra.mxu0 %v1749
      %1786 = vmatprep.subr.mxu0 0.0
      %1787 = vmatpush1.msra.mxu0 %v1748
      %1788 = vmatprep.subr.mxu0 0.0
      %1789 = vmatpush1.msra.mxu0 %v1747
      %1790 = vmatprep.subr.mxu0 0.0
      %1791 = vmatpush1.msra.mxu0 %v1746
      %1792 = vmatprep.subr.mxu0 0.0
      %1793 = vmatpush1.msra.mxu0 %v1745
      %1794 = vmatprep.subr.mxu0 0.0
      %1795 = vmatpush1.msra.mxu0 %v1744
      %1796 = vmatprep.subr.mxu0 0.0
      %1797 = vmatpush1.msra.mxu0 %v1743
      %1798 = vmatprep.subr.mxu0 0.0
      %1799 = vmatpush2.msra.mxu0 0.0
      %1800 = vmatprep.subr.mxu0 0.0
      %1801 = vmatpush2.msra.mxu0 0.0
      %1802 = vmatprep.subr.mxu0 0.0
      %1803 = vmatpush2.msra.mxu0 0.0
      %1804 = vmatprep.subr.mxu0 0.0
      %1805 = vmatpush2.msra.mxu0 0.0
      %1806 = vmatprep.subr.mxu0 0.0
      %1807 = vmatpush2.msra.mxu0 0.0
      %1808 = vmatprep.subr.mxu0 0.0
      %1809 = vmatpush2.msra.mxu0 0.0
      %1810 = vmatprep.subr.mxu0 0.0
      %1811 = vmatpush2.msra.mxu0 0.0
      %1812 = vmatprep.subr.mxu0 0.0
      %1813 = vmatpush2.msra.mxu0 0.0
      %1814 = vmatprep.subr.mxu0 0.0
      %1815 = vmatpush2.msra.mxu0 0.0
      %1816 = vmatprep.subr.mxu0 0.0
      %1817 = vmatpush2.msra.mxu0 0.0
      %1818 = vmatprep.subr.mxu0 0.0
      %1819 = vmatpush2.msra.mxu0 0.0
      %1820 = vmatprep.subr.mxu0 0.0
      %1821 = vmatpush2.msra.mxu0 0.0
      %1822 = vmatprep.subr.mxu0 0.0
      %1823 = vmatpush2.msra.mxu0 0.0
      %1824 = vmatprep.subr.mxu0 0.0
      %1825 = vmatpush2.msra.mxu0 0.0
      %1826 = vmatprep.subr.mxu0 0.0
      %1827 = vmatpush2.msra.mxu0 0.0
      %1828 = vmatprep.subr.mxu0 0.0
      %1829 = vmatpush2.msra.mxu0 0.0
      %1830 = vmatprep.mubr.f32.mxu0 0.0
      %1831 = vmatmul.mubr.f32.gmra.mxu0 %v1742
      %v1832 = vpop.f32.mrf.mxu0
      %v1833 = vadd.f32 %v1764, %v1832
      %v1834 = vpop.f32.mrf.mxu0
      %1835 = vdwg.mxu0
      %1836 = vst [vmem:[#allocation14] sm:$0xff] %v1833
    $region65: #{tpu_custom_call.1} parent=1 // pred_fallthru
      _
    // Predicated region
    $region66: #{tpu_custom_call.1} parent=1 // pred_check
      _
    $region67: #{tpu_custom_call.1} parent=1 // pred_check_branch
      %1838 = sbr.rel (0) target = $region69
    $region68: #{tpu_custom_call.1} parent=1 // pred_region
      %s1840 = ssub.s32 128, 128
      %1841 = vsyncadd [#allocation5], %s1840
      %s1843 = sshll.u32 [#allocation14], 4
      %s1844 = int_to_ptr.vmem [resolvable:$true] %s1843
      %1846 = dma.vmem_to_hbm [thread:$0]  %s1844, 128, %s8, [#allocation5]
    $region69: #{tpu_custom_call.1} parent=1 // pred_fallthru
      _
    // Predicated region
    $region70: #{tpu_custom_call.1} parent=1 // pred_check
      _
    $region71: #{tpu_custom_call.1} parent=1 // pred_check_branch
      %1848 = sbr.rel (0) target = $region73
    $region72: #{tpu_custom_call.1} parent=1 // pred_region
      %1849 = dma.done [#allocation5], 128
    $region73: #{tpu_custom_call.1} parent=1 // pred_fallthru
      _
    %1850 = vsyncpa [#allocation4], 1
    %1851 = vsyncpa [#allocation7], 1
    %1852 = vsyncpa [#allocation10], 1
    %1853 = vsyncpa [#allocation13], 1
    %1854 = vsyncpa [#allocation5], 1

</llo_original>
